<compile_context>
chip_gen: v6e
topology: v6e:2x2x1
jax: 0.10.0
libtpu: 0.0.40
codegen_flags: <defaults>
</compile_context>

<pallas_src>
import functools

import jax
import jax.numpy as jnp
from jax.experimental import pallas as pl
from jax.experimental.pallas import tpu as pltpu


def _round_up(x, m):
    return ((x + m - 1) // m) * m


def _make_conv_relu_kernel(C_PAD, W, KH, KW, OUT, MIW):
    """Kernel for one image: out = relu(bias + sum_t W_t @ shift_t(x))."""

    def kernel(x_ref, w_ref, b_ref, o_ref):
        # x_ref: (1, C_PAD, HWP)      one image, channels x flattened (H*W)+pad
        # w_ref: (KH*KW, OUT, C_PAD)  resident across the grid
        # b_ref: (OUT, 1)             resident across the grid
        # o_ref: (1, OUT, MIW)        MIW = OH*W (full-width rows; wrapper crops)
        acc = jnp.zeros((OUT, MIW), dtype=jnp.float32)
        for t in range(KH * KW):
            kh, kw = divmod(t, KW)
            off = kh * W + kw
            # Implicit im2col: tap (kh, kw) for every output position is just a
            # contiguous lane window of the flattened image.
            xs = x_ref[0, :, off:off + MIW]        # (C_PAD, MIW), static slice
            wk = w_ref[t]                          # (OUT, C_PAD)
            acc = acc + jnp.dot(wk, xs, preferred_element_type=jnp.float32)
        acc = acc + b_ref[...]                     # (OUT, 1) broadcast over lanes
        o_ref[0] = jnp.maximum(acc, 0.0).astype(o_ref.dtype)

    return kernel


@functools.partial(jax.jit, static_argnames=("ker",))
def conv2d_relu(x, weight, bias, *, ker=3):
    """x: (N, C, H, W) f32; weight: (OUT, C, KH, KW); bias: (OUT,) -> NCHW out."""
    N, C, H, W = x.shape
    OUT = weight.shape[0]
    KH = KW = ker
    OH, OW = H - KH + 1, W - KW + 1
    MIW = OH * W                                   # full-width rows, cropped later
    C_PAD = _round_up(C, 8)                        # 10 -> 16 (sublane multiple)
    HWP = _round_up(H * W + KW - 1, 128)           # last tap window must fit

    # --- light glue: NO im2col materialization -------------------------------
    # (N, C, H, W) -> (N, C, H*W) is a free reshape; pad channels + tail lanes.
    xf = x.reshape(N, C, H * W).astype(jnp.float32)
    xf = jnp.pad(xf, ((0, 0), (0, C_PAD - C), (0, HWP - H * W)))

    # weight (OUT, C, KH, KW) -> (KH*KW, OUT, C_PAD); w[t, o, c] = weight[o, c, kh, kw]
    w = jnp.transpose(weight, (2, 3, 0, 1)).astype(jnp.float32)   # (KH, KW, OUT, C)
    w = w.reshape(KH * KW, OUT, C)
    w = jnp.pad(w, ((0, 0), (0, 0), (0, C_PAD - C)))
    b = bias.astype(jnp.float32).reshape(OUT, 1)

    kernel = _make_conv_relu_kernel(C_PAD, W, KH, KW, OUT, MIW)

    cost = pl.CostEstimate(
        flops=2 * N * KH * KW * OUT * C_PAD * MIW,
        transcendentals=0,
        bytes_accessed=4 * (N * C_PAD * HWP + KH * KW * OUT * C_PAD
                            + OUT + N * OUT * MIW),
    )

    out_flat = pl.pallas_call(
        kernel,
        out_shape=jax.ShapeDtypeStruct((N, OUT, MIW), jnp.float32),
        grid=(N,),
        in_specs=[
            pl.BlockSpec((1, C_PAD, HWP), lambda n: (n, 0, 0)),       # image n
            pl.BlockSpec((KH * KW, OUT, C_PAD), lambda n: (0, 0, 0)), # weights (resident)
            pl.BlockSpec((OUT, 1), lambda n: (0, 0)),                 # bias (resident)
        ],
        out_specs=pl.BlockSpec((1, OUT, MIW), lambda n: (n, 0, 0)),
        compiler_params=pltpu.CompilerParams(
            dimension_semantics=("parallel",)),    # v7x: one image per TensorCore
        cost_estimate=cost,
    )(xf, w, b)

    # (N, OUT, OH*W) -> (N, OUT, OH, W) is free; crop the KW-1 invalid columns.
    out = out_flat.reshape(N, OUT, OH, W)[:, :, :, :OW]
    return out


if __name__ == "__main__":
    key = jax.random.PRNGKey(0)
    k_x, k_w, k_b = jax.random.split(key, 3)

    N, C, H, W = 2, 10, 16, 16
    OUT, KER = 100, 3

    x = jax.random.normal(k_x, (N, C, H, W), dtype=jnp.float32)
    # Deterministic synthetic parameters (Conv2d(10, 100, 3) init-like bounds).
    fan_in = C * KER * KER
    bound = 1.0 / (fan_in ** 0.5)
    weight = jax.random.uniform(k_w, (OUT, C, KER, KER),
                                minval=-bound, maxval=bound, dtype=jnp.float32)
    bias = jax.random.uniform(k_b, (OUT,), minval=-bound, maxval=bound,
                              dtype=jnp.float32)

    y = conv2d_relu(x, weight, bias, ker=KER)
    jax.block_until_ready(y)

    # Sanity check against a pure-JAX reference of the same conv + relu.
    # Tolerance allows for MXU matmul precision differences between the two paths.
    ref = jax.lax.conv_general_dilated(
        x, weight, window_strides=(1, 1), padding="VALID",
        dimension_numbers=("NCHW", "OIHW", "NCHW"))
    ref = jnp.maximum(ref + bias[None, :, None, None], 0.0)
    assert y.shape == (N, OUT, H - KER + 1, W - KER + 1)
    assert jnp.allclose(y, ref, atol=2e-2, rtol=2e-2)

    print("KERNEL_OK")
</pallas_src>

<mosaic_0001>
module attributes {stable_mosaic.version = 11 : i64} {
  func.func @kernel(%arg0: i32, %arg1: memref<1x16x384xf32, #tpu.memory_space<vmem>>, %arg2: memref<9x100x16xf32, #tpu.memory_space<vmem>>, %arg3: memref<100x1xf32, #tpu.memory_space<vmem>>, %arg4: memref<1x100x224xf32, #tpu.memory_space<vmem>>) attributes {dimension_semantics = [#tpu.dimension_semantics<parallel>], iteration_bounds = array<i64: 2>, scalar_prefetch = 0 : i64, scratch_operands = 0 : i64, tpu.core_type = #tpu.core_type<tc>, window_params = [{transform_indices = @transform_0, window_bounds = array<i64: 1, 16, 384>}, {pipeline_mode = #tpu.pipeline_mode<synchronous>, transform_indices = @transform_1, window_bounds = array<i64: 9, 100, 16>}, {pipeline_mode = #tpu.pipeline_mode<synchronous>, transform_indices = @transform_2, window_bounds = array<i64: 100, 1>}, {transform_indices = @transform_3, window_bounds = array<i64: 1, 100, 224>}]} {
    %cst = arith.constant 0.000000e+00 : f32
    %0 = vector.broadcast %cst : f32 to vector<100x224xf32>
    %c0 = arith.constant 0 : index
    %c0_0 = arith.constant 0 : index
    %c0_1 = arith.constant 0 : index
    %1 = vector.load %arg1[%c0, %c0_0, %c0_1] : memref<1x16x384xf32, #tpu.memory_space<vmem>>, vector<1x16x224xf32>
    %2 = vector.shape_cast %1 : vector<1x16x224xf32> to vector<16x224xf32>
    %c0_2 = arith.constant 0 : index
    %c0_3 = arith.constant 0 : index
    %c0_4 = arith.constant 0 : index
    %3 = vector.load %arg2[%c0_2, %c0_3, %c0_4] : memref<9x100x16xf32, #tpu.memory_space<vmem>>, vector<1x100x16xf32>
    %4 = vector.shape_cast %3 : vector<1x100x16xf32> to vector<100x16xf32>
    %cst_5 = arith.constant dense<0.000000e+00> : vector<100x224xf32>
    %5 = tpu.matmul %4, %2, %cst_5 {dimension_numbers = #tpu.dot_dimension_numbers<[1], [0], [0], [1], [0, 0, 1, 1], [], []>} : vector<100x16xf32>, vector<16x224xf32>, vector<100x224xf32> -> vector<100x224xf32>
    %6 = arith.addf %0, %5 : vector<100x224xf32>
    %c0_6 = arith.constant 0 : index
    %c0_7 = arith.constant 0 : index
    %c1 = arith.constant 1 : index
    %7 = vector.load %arg1[%c0_6, %c0_7, %c1] : memref<1x16x384xf32, #tpu.memory_space<vmem>>, vector<1x16x224xf32>
    %8 = vector.shape_cast %7 : vector<1x16x224xf32> to vector<16x224xf32>
    %c1_8 = arith.constant 1 : index
    %c0_9 = arith.constant 0 : index
    %c0_10 = arith.constant 0 : index
    %9 = vector.load %arg2[%c1_8, %c0_9, %c0_10] : memref<9x100x16xf32, #tpu.memory_space<vmem>>, vector<1x100x16xf32>
    %10 = vector.shape_cast %9 : vector<1x100x16xf32> to vector<100x16xf32>
    %cst_11 = arith.constant dense<0.000000e+00> : vector<100x224xf32>
    %11 = tpu.matmul %10, %8, %cst_11 {dimension_numbers = #tpu.dot_dimension_numbers<[1], [0], [0], [1], [0, 0, 1, 1], [], []>} : vector<100x16xf32>, vector<16x224xf32>, vector<100x224xf32> -> vector<100x224xf32>
    %12 = arith.addf %6, %11 : vector<100x224xf32>
    %c0_12 = arith.constant 0 : index
    %c0_13 = arith.constant 0 : index
    %c2 = arith.constant 2 : index
    %13 = vector.load %arg1[%c0_12, %c0_13, %c2] : memref<1x16x384xf32, #tpu.memory_space<vmem>>, vector<1x16x224xf32>
    %14 = vector.shape_cast %13 : vector<1x16x224xf32> to vector<16x224xf32>
    %c2_14 = arith.constant 2 : index
    %c0_15 = arith.constant 0 : index
    %c0_16 = arith.constant 0 : index
    %15 = vector.load %arg2[%c2_14, %c0_15, %c0_16] : memref<9x100x16xf32, #tpu.memory_space<vmem>>, vector<1x100x16xf32>
    %16 = vector.shape_cast %15 : vector<1x100x16xf32> to vector<100x16xf32>
    %cst_17 = arith.constant dense<0.000000e+00> : vector<100x224xf32>
    %17 = tpu.matmul %16, %14, %cst_17 {dimension_numbers = #tpu.dot_dimension_numbers<[1], [0], [0], [1], [0, 0, 1, 1], [], []>} : vector<100x16xf32>, vector<16x224xf32>, vector<100x224xf32> -> vector<100x224xf32>
    %18 = arith.addf %12, %17 : vector<100x224xf32>
    %c0_18 = arith.constant 0 : index
    %c0_19 = arith.constant 0 : index
    %c16 = arith.constant 16 : index
    %19 = vector.load %arg1[%c0_18, %c0_19, %c16] : memref<1x16x384xf32, #tpu.memory_space<vmem>>, vector<1x16x224xf32>
    %20 = vector.shape_cast %19 : vector<1x16x224xf32> to vector<16x224xf32>
    %c3 = arith.constant 3 : index
    %c0_20 = arith.constant 0 : index
    %c0_21 = arith.constant 0 : index
    %21 = vector.load %arg2[%c3, %c0_20, %c0_21] : memref<9x100x16xf32, #tpu.memory_space<vmem>>, vector<1x100x16xf32>
    %22 = vector.shape_cast %21 : vector<1x100x16xf32> to vector<100x16xf32>
    %cst_22 = arith.constant dense<0.000000e+00> : vector<100x224xf32>
    %23 = tpu.matmul %22, %20, %cst_22 {dimension_numbers = #tpu.dot_dimension_numbers<[1], [0], [0], [1], [0, 0, 1, 1], [], []>} : vector<100x16xf32>, vector<16x224xf32>, vector<100x224xf32> -> vector<100x224xf32>
    %24 = arith.addf %18, %23 : vector<100x224xf32>
    %c0_23 = arith.constant 0 : index
    %c0_24 = arith.constant 0 : index
    %c17 = arith.constant 17 : index
    %25 = vector.load %arg1[%c0_23, %c0_24, %c17] : memref<1x16x384xf32, #tpu.memory_space<vmem>>, vector<1x16x224xf32>
    %26 = vector.shape_cast %25 : vector<1x16x224xf32> to vector<16x224xf32>
    %c4 = arith.constant 4 : index
    %c0_25 = arith.constant 0 : index
    %c0_26 = arith.constant 0 : index
    %27 = vector.load %arg2[%c4, %c0_25, %c0_26] : memref<9x100x16xf32, #tpu.memory_space<vmem>>, vector<1x100x16xf32>
    %28 = vector.shape_cast %27 : vector<1x100x16xf32> to vector<100x16xf32>
    %cst_27 = arith.constant dense<0.000000e+00> : vector<100x224xf32>
    %29 = tpu.matmul %28, %26, %cst_27 {dimension_numbers = #tpu.dot_dimension_numbers<[1], [0], [0], [1], [0, 0, 1, 1], [], []>} : vector<100x16xf32>, vector<16x224xf32>, vector<100x224xf32> -> vector<100x224xf32>
    %30 = arith.addf %24, %29 : vector<100x224xf32>
    %c0_28 = arith.constant 0 : index
    %c0_29 = arith.constant 0 : index
    %c18 = arith.constant 18 : index
    %31 = vector.load %arg1[%c0_28, %c0_29, %c18] : memref<1x16x384xf32, #tpu.memory_space<vmem>>, vector<1x16x224xf32>
    %32 = vector.shape_cast %31 : vector<1x16x224xf32> to vector<16x224xf32>
    %c5 = arith.constant 5 : index
    %c0_30 = arith.constant 0 : index
    %c0_31 = arith.constant 0 : index
    %33 = vector.load %arg2[%c5, %c0_30, %c0_31] : memref<9x100x16xf32, #tpu.memory_space<vmem>>, vector<1x100x16xf32>
    %34 = vector.shape_cast %33 : vector<1x100x16xf32> to vector<100x16xf32>
    %cst_32 = arith.constant dense<0.000000e+00> : vector<100x224xf32>
    %35 = tpu.matmul %34, %32, %cst_32 {dimension_numbers = #tpu.dot_dimension_numbers<[1], [0], [0], [1], [0, 0, 1, 1], [], []>} : vector<100x16xf32>, vector<16x224xf32>, vector<100x224xf32> -> vector<100x224xf32>
    %36 = arith.addf %30, %35 : vector<100x224xf32>
    %c0_33 = arith.constant 0 : index
    %c0_34 = arith.constant 0 : index
    %c32 = arith.constant 32 : index
    %37 = vector.load %arg1[%c0_33, %c0_34, %c32] : memref<1x16x384xf32, #tpu.memory_space<vmem>>, vector<1x16x224xf32>
    %38 = vector.shape_cast %37 : vector<1x16x224xf32> to vector<16x224xf32>
    %c6 = arith.constant 6 : index
    %c0_35 = arith.constant 0 : index
    %c0_36 = arith.constant 0 : index
    %39 = vector.load %arg2[%c6, %c0_35, %c0_36] : memref<9x100x16xf32, #tpu.memory_space<vmem>>, vector<1x100x16xf32>
    %40 = vector.shape_cast %39 : vector<1x100x16xf32> to vector<100x16xf32>
    %cst_37 = arith.constant dense<0.000000e+00> : vector<100x224xf32>
    %41 = tpu.matmul %40, %38, %cst_37 {dimension_numbers = #tpu.dot_dimension_numbers<[1], [0], [0], [1], [0, 0, 1, 1], [], []>} : vector<100x16xf32>, vector<16x224xf32>, vector<100x224xf32> -> vector<100x224xf32>
    %42 = arith.addf %36, %41 : vector<100x224xf32>
    %c0_38 = arith.constant 0 : index
    %c0_39 = arith.constant 0 : index
    %c33 = arith.constant 33 : index
    %43 = vector.load %arg1[%c0_38, %c0_39, %c33] : memref<1x16x384xf32, #tpu.memory_space<vmem>>, vector<1x16x224xf32>
    %44 = vector.shape_cast %43 : vector<1x16x224xf32> to vector<16x224xf32>
    %c7 = arith.constant 7 : index
    %c0_40 = arith.constant 0 : index
    %c0_41 = arith.constant 0 : index
    %45 = vector.load %arg2[%c7, %c0_40, %c0_41] : memref<9x100x16xf32, #tpu.memory_space<vmem>>, vector<1x100x16xf32>
    %46 = vector.shape_cast %45 : vector<1x100x16xf32> to vector<100x16xf32>
    %cst_42 = arith.constant dense<0.000000e+00> : vector<100x224xf32>
    %47 = tpu.matmul %46, %44, %cst_42 {dimension_numbers = #tpu.dot_dimension_numbers<[1], [0], [0], [1], [0, 0, 1, 1], [], []>} : vector<100x16xf32>, vector<16x224xf32>, vector<100x224xf32> -> vector<100x224xf32>
    %48 = arith.addf %42, %47 : vector<100x224xf32>
    %c0_43 = arith.constant 0 : index
    %c0_44 = arith.constant 0 : index
    %c34 = arith.constant 34 : index
    %49 = vector.load %arg1[%c0_43, %c0_44, %c34] : memref<1x16x384xf32, #tpu.memory_space<vmem>>, vector<1x16x224xf32>
    %50 = vector.shape_cast %49 : vector<1x16x224xf32> to vector<16x224xf32>
    %c8 = arith.constant 8 : index
    %c0_45 = arith.constant 0 : index
    %c0_46 = arith.constant 0 : index
    %51 = vector.load %arg2[%c8, %c0_45, %c0_46] : memref<9x100x16xf32, #tpu.memory_space<vmem>>, vector<1x100x16xf32>
    %52 = vector.shape_cast %51 : vector<1x100x16xf32> to vector<100x16xf32>
    %cst_47 = arith.constant dense<0.000000e+00> : vector<100x224xf32>
    %53 = tpu.matmul %52, %50, %cst_47 {dimension_numbers = #tpu.dot_dimension_numbers<[1], [0], [0], [1], [0, 0, 1, 1], [], []>} : vector<100x16xf32>, vector<16x224xf32>, vector<100x224xf32> -> vector<100x224xf32>
    %54 = arith.addf %48, %53 : vector<100x224xf32>
    %c0_48 = arith.constant 0 : index
    %c0_49 = arith.constant 0 : index
    %55 = vector.load %arg3[%c0_48, %c0_49] : memref<100x1xf32, #tpu.memory_space<vmem>>, vector<100x1xf32>
    %56 = vector.broadcast %55 : vector<100x1xf32> to vector<100x224xf32>
    %57 = arith.addf %54, %56 : vector<100x224xf32>
    %cst_50 = arith.constant 0.000000e+00 : f32
    %58 = vector.broadcast %cst_50 : f32 to vector<100x224xf32>
    %59 = arith.maximumf %57, %58 : vector<100x224xf32>
    %c0_51 = arith.constant 0 : index
    %c0_52 = arith.constant 0 : index
    %c0_53 = arith.constant 0 : index
    %60 = vector.load %arg4[%c0_51, %c0_52, %c0_53] : memref<1x100x224xf32, #tpu.memory_space<vmem>>, vector<1x100x224xf32>
    %61 = vector.shape_cast %60 : vector<1x100x224xf32> to vector<100x224xf32>
    %62 = vector.shape_cast %59 : vector<100x224xf32> to vector<1x100x224xf32>
    tpu.vector_store %arg4[%c0_51, %c0_52, %c0_53], %62 {strides = array<i32>} : memref<1x100x224xf32, #tpu.memory_space<vmem>>, vector<1x100x224xf32>,
    return
  }
  func.func @transform_0(%arg0: i32) -> (i32, i32, i32) {
    %c0_i32 = arith.constant 0 : i32
    %c0_i32_0 = arith.constant 0 : i32
    %c0_i32_1 = arith.constant 0 : i32
    return %arg0, %c0_i32, %c0_i32_0 : i32, i32, i32
  }
  func.func @transform_1(%arg0: i32) -> (i32, i32, i32) {
    %c0_i32 = arith.constant 0 : i32
    %c0_i32_0 = arith.constant 0 : i32
    %c0_i32_1 = arith.constant 0 : i32
    %c0_i32_2 = arith.constant 0 : i32
    return %c0_i32, %c0_i32_0, %c0_i32_1 : i32, i32, i32
  }
  func.func @transform_2(%arg0: i32) -> (i32, i32) {
    %c0_i32 = arith.constant 0 : i32
    %c0_i32_0 = arith.constant 0 : i32
    %c0_i32_1 = arith.constant 0 : i32
    return %c0_i32, %c0_i32_0 : i32, i32
  }
  func.func @transform_3(%arg0: i32) -> (i32, i32, i32) {
    %c0_i32 = arith.constant 0 : i32
    %c0_i32_0 = arith.constant 0 : i32
    %c0_i32_1 = arith.constant 0 : i32
    return %arg0, %c0_i32, %c0_i32_0 : i32, i32, i32
  }
}

</mosaic_0001>

<llo_original>
// kernel: conv2d_relu.1
$region0: #{conv2d_relu.1}
  #allocation0 [shape = 'u32[]', space=smem, size = 0x4, offset = 0x4, fixed_abs, tag = 'smem constant byte address 0x4 - core index']
  #allocation1 [shape = 'u32[144,128]{1,0:T(1,128)}', space=vmem, size = 0x12000, scoped, tag = 'internal scratch']
  %s0 = inlined_call_operand.vmem [shape: f32[2,16,384], index: 0, kind: input, shape index: {}]
  %s1 = inlined_call_operand.vmem [shape: f32[9,100,16], index: 1, kind: input, shape index: {}]
  %s2 = inlined_call_operand.vmem [shape: f32[100,1], index: 2, kind: input, shape index: {}]
  %s3 = inlined_call_operand.vmem [shape: f32[2,100,224], index: 3, kind: output, shape index: {}]
  %s4 = sld [smem:[#allocation0]]
  $region45: #{conv2d_relu.1} parent=0
    _
  %s6 = ssub.s32 1, %s4
  %s7 = scalar_select 0, %s6, %s4
  loop: start=0, step=1, limit=4
  $region2: #{conv2d_relu.1} parent=0 // loop_pre_header
    _
  $region3: #{conv2d_relu.1} parent=0 // loop_header
    %s9 = sphi 0, %s13
    %p10 = scmp.ge.s32.totalorder %s9, 4
    %s19 = sphi 0, %s21
    %s22 = sphi 0, %s19
    %s23 = sphi 0, %s22
    %s39 = sphi 0, %s23
    %s43 = sphi 0, %s43
    %s45 = sphi 0, %s43
    %s46 = sphi 0, %s45
    %s60 = sphi 0, %s46
    %s64 = sphi 0, %s64
    %s66 = sphi 0, %s64
    %s67 = sphi 0, %s66
    %s81 = sphi 0, %s67
    %s87 = sphi 0, %s89
    %s90 = sphi 0, %s87
    %s91 = sphi 0, %s90
    %s107 = sphi 0, %s91
  $region4: #{conv2d_relu.1} parent=0 // loop_header_branch
    %12 = sbr.rel (%p10) target = $region8
  $region5: #{conv2d_relu.1} parent=0 // loop_body
    %s14 = ssub.s32 %s9, 1
    %s15 = ssub.s32 %s9, 2
    %s16 = sadd.s32 %s9, 1
    %s17 = ssub.s32 %s9, %s16
    %p18 = scmp.eq.s32.totalorder %s17, 0
    %s20 = sadd.s32 %s19, 1
    %s21 = scalar_select %p18, %s19, %s20
    %p24 = pneg %p18
    %p25 = scmp.eq.s32.totalorder %s9, 1
    %p26 = por %p24, %p25
    %p27 = scmp.ne.s32.totalorder %s19, %s22
    %p28 = scmp.eq.s32.totalorder %s9, 0
    %p29 = por %p27, %p28
    %p30 = scmp.ne.s32.totalorder %s19, %s22
    %p31 = scmp.eq.s32.totalorder %s14, 1
    %p32 = por %p30, %p31
    %p33 = scmp.ne.s32.totalorder %s22, %s23
    %p34 = scmp.eq.s32.totalorder %s14, 0
    %p35 = por %p33, %p34
    %p36 = scmp.ne.s32.totalorder %s22, %s23
    %p37 = scmp.eq.s32.totalorder %s15, 1
    %p38 = por %p36, %p37
    %p40 = scmp.ne.s32.totalorder %s23, %s39
    %p41 = scmp.eq.s32.totalorder %s15, 0
    %p42 = por %p40, %p41
    %s44 = sadd.s32 %s43, 1
    %p47 = scmp.eq.s32.totalorder %s9, 1
    %p48 = scmp.ne.s32.totalorder %s43, %s45
    %p49 = scmp.eq.s32.totalorder %s9, 0
    %p50 = por %p48, %p49
    %p51 = scmp.ne.s32.totalorder %s43, %s45
    %p52 = scmp.eq.s32.totalorder %s14, 1
    %p53 = por %p51, %p52
    %p54 = scmp.ne.s32.totalorder %s45, %s46
    %p55 = scmp.eq.s32.totalorder %s14, 0
    %p56 = por %p54, %p55
    %p57 = scmp.ne.s32.totalorder %s45, %s46
    %p58 = scmp.eq.s32.totalorder %s15, 1
    %p59 = por %p57, %p58
    %p61 = scmp.ne.s32.totalorder %s46, %s60
    %p62 = scmp.eq.s32.totalorder %s15, 0
    %p63 = por %p61, %p62
    %s65 = sadd.s32 %s64, 1
    %p68 = scmp.eq.s32.totalorder %s9, 1
    %p69 = scmp.ne.s32.totalorder %s64, %s66
    %p70 = scmp.eq.s32.totalorder %s9, 0
    %p71 = por %p69, %p70
    %p72 = scmp.ne.s32.totalorder %s64, %s66
    %p73 = scmp.eq.s32.totalorder %s14, 1
    %p74 = por %p72, %p73
    %p75 = scmp.ne.s32.totalorder %s66, %s67
    %p76 = scmp.eq.s32.totalorder %s14, 0
    %p77 = por %p75, %p76
    %p78 = scmp.ne.s32.totalorder %s66, %s67
    %p79 = scmp.eq.s32.totalorder %s15, 1
    %p80 = por %p78, %p79
    %p82 = scmp.ne.s32.totalorder %s67, %s81
    %p83 = scmp.eq.s32.totalorder %s15, 0
    %p84 = por %p82, %p83
    %s85 = ssub.s32 %s9, %s16
    %p86 = scmp.eq.s32.totalorder %s85, 0
    %s88 = sadd.s32 %s87, 1
    %s89 = scalar_select %p86, %s87, %s88
    %p92 = pneg %p86
    %p93 = scmp.eq.s32.totalorder %s9, 1
    %p94 = por %p92, %p93
    %p95 = scmp.ne.s32.totalorder %s87, %s90
    %p96 = scmp.eq.s32.totalorder %s9, 0
    %p97 = por %p95, %p96
    %p98 = scmp.ne.s32.totalorder %s87, %s90
    %p99 = scmp.eq.s32.totalorder %s14, 1
    %p100 = por %p98, %p99
    %p101 = scmp.ne.s32.totalorder %s90, %s91
    %p102 = scmp.eq.s32.totalorder %s14, 0
    %p103 = por %p101, %p102
    %p104 = scmp.ne.s32.totalorder %s90, %s91
    %p105 = scmp.eq.s32.totalorder %s15, 1
    %p106 = por %p104, %p105
    %p108 = scmp.ne.s32.totalorder %s91, %s107
    %p109 = scmp.eq.s32.totalorder %s15, 0
    %p110 = por %p108, %p109
    %p111 = scmp.le.s32.totalorder 1, %s9
    %p112 = scmp.lt.s32.totalorder %s9, 3
    %p113 = pnand %p111, %p112
    %p114 = pneg %p113
    // Predicated region
    $region9: #{conv2d_relu.1} parent=5 // pred_check
      _
    $region10: #{conv2d_relu.1} parent=5 // pred_check_branch
      %116 = sbr.rel (%p113) target = $region12
    $region11: #{conv2d_relu.1} parent=5 // pred_region
      %s117 = ssub.s32 %s9, 1
      // Predicated region
      $region13: #{conv2d_relu.1} parent=11 // pred_check
        %p118 = pneg %p56
      $region14: #{conv2d_relu.1} parent=11 // pred_check_branch
        %120 = sbr.rel (%p118) target = $region16
      $region15: #{conv2d_relu.1} parent=11 // pred_region
        _
      $region16: #{conv2d_relu.1} parent=11 // pred_fallthru
        _
      // Predicated region
      $region17: #{conv2d_relu.1} parent=11 // pred_check
        %p121 = pneg %p77
      $region18: #{conv2d_relu.1} parent=11 // pred_check_branch
        %123 = sbr.rel (%p121) target = $region20
      $region19: #{conv2d_relu.1} parent=11 // pred_region
        _
      $region20: #{conv2d_relu.1} parent=11 // pred_fallthru
        _
    $region12: #{conv2d_relu.1} parent=5 // pred_fallthru
      _
    %p124 = scmp.lt.s32.totalorder %s9, 2
    // Predicated region
    $region21: #{conv2d_relu.1} parent=5 // pred_check
      %p125 = pneg %p124
    $region22: #{conv2d_relu.1} parent=5 // pred_check_branch
      %127 = sbr.rel (%p125) target = $region24
    $region23: #{conv2d_relu.1} parent=5 // pred_region
      // Predicated region
      $region25: #{conv2d_relu.1} parent=23 // pred_check
        %p128 = pneg %p29
      $region26: #{conv2d_relu.1} parent=23 // pred_check_branch
        %130 = sbr.rel (%p128) target = $region28
      $region27: #{conv2d_relu.1} parent=23 // pred_region
        %p131 = scmp.lt.s32.totalorder %s9, 1
        %s132 = scalar_select %p131, %s9, 1
        %s133 = smul.addr %s132, 6
        %s134 = smul.addr %s133, 8
        %s135 = scalar_lea.vmem %s0, %s134
      $region28: #{conv2d_relu.1} parent=23 // pred_fallthru
        _
    $region24: #{conv2d_relu.1} parent=5 // pred_fallthru
      _
    %p136 = scmp.le.s32.totalorder 1, %s9
    %p137 = scmp.lt.s32.totalorder %s9, 3
    %p138 = pnand %p136, %p137
    %p139 = pneg %p138
    // Predicated region
    $region29: #{conv2d_relu.1} parent=5 // pred_check
      _
    $region30: #{conv2d_relu.1} parent=5 // pred_check_branch
      %141 = sbr.rel (%p138) target = $region32
    $region31: #{conv2d_relu.1} parent=5 // pred_region
      %s142 = ssub.s32 %s9, 1
      %p143 = scmp.lt.s32.totalorder %s14, 1
      %s144 = scalar_select %p143, %s14, 1
      %s145 = smul.addr %s144, 6
      %s146 = smul.addr %s145, 8
      %s147 = scalar_lea.vmem %s0, %s146
      %p148 = pneg %p35
      %p149 = pneg %p32
      %p150 = pneg %p56
      %p151 = pneg %p53
      %p152 = pneg %p77
      %p153 = pneg %p74
      %p154 = pneg %p103
      %p155 = pneg %p100
      %p156 = scmp.lt.s32.totalorder %s14, 1
      %s157 = scalar_select %p156, %s14, 1
      %s158 = smul.addr %s157, 26
      %s159 = smul.addr %s158, 8
      %s160 = scalar_lea.vmem %s3, %s159
      %p161 = scmp.lt.s32.totalorder %s14, 1
      %s162 = scalar_select %p161, %s14, 1
      %s163 = smul.addr %s162, 6
      %s164 = smul.addr %s163, 8
      %s165 = scalar_lea.vmem %s0, %s164
      %p166 = scmp.lt.s32.totalorder %s14, 1
      %s167 = scalar_select %p166, %s14, 1
      %s168 = smul.addr %s167, 26
      %s169 = smul.addr %s168, 8
      %s170 = scalar_lea.vmem %s3, %s169
      %v171 = vld [vmem:[%s165] sm:$0xff]
      %v172 = vld [vmem:[%s165 + $0x8] sm:$0xff]
      %v173 = vld [vmem:[%s165 + $0x18] sm:$0xff]
      %v174 = vld [vmem:[%s165 + $0x20] sm:$0xff]
      %v175 = vld [vmem:[%s1] sm:$0xff]
      %v176 = vld [vmem:[%s1 + $0x8] sm:$0xff]
      %v177 = vld [vmem:[%s1 + $0x10] sm:$0xff]
      %v178 = vld [vmem:[%s1 + $0x18] sm:$0xff]
      %v179 = vld [vmem:[%s1 + $0x20] sm:$0xff]
      %v180 = vld [vmem:[%s1 + $0x28] sm:$0xff]
      %v181 = vld [vmem:[%s1 + $0x30] sm:$0xff]
      %v182 = vld [vmem:[%s1 + $0x38] sm:$0xff]
      %v183 = vld [vmem:[%s1 + $0x40] sm:$0xff]
      %v184 = vld [vmem:[%s1 + $0x48] sm:$0xff]
      %v185 = vld [vmem:[%s1 + $0x50] sm:$0xff]
      %v186 = vld [vmem:[%s1 + $0x58] sm:$0xff]
      %v187 = vld [vmem:[%s1 + $0x60] sm:$0xf]
      %s188 = scalar_lea.vmem %s1, 104
      %v189 = vld [vmem:[%s188] sm:$0xff]
      %v190 = vld [vmem:[%s188 + $0x8] sm:$0xff]
      %v191 = vld [vmem:[%s188 + $0x10] sm:$0xff]
      %v192 = vld [vmem:[%s188 + $0x18] sm:$0xff]
      %v193 = vld [vmem:[%s188 + $0x20] sm:$0xff]
      %v194 = vld [vmem:[%s188 + $0x28] sm:$0xff]
      %v195 = vld [vmem:[%s188 + $0x30] sm:$0xff]
      %v196 = vld [vmem:[%s188 + $0x38] sm:$0xff]
      %v197 = vld [vmem:[%s188 + $0x40] sm:$0xff]
      %v198 = vld [vmem:[%s188 + $0x48] sm:$0xff]
      %v199 = vld [vmem:[%s188 + $0x50] sm:$0xff]
      %v200 = vld [vmem:[%s188 + $0x58] sm:$0xff]
      %v201 = vld [vmem:[%s188 + $0x60] sm:$0xf]
      %206 = vrot.lane.b32.xlu0 %v171, 127
      %v207 = vpop.permute.xlu0 %206
      %208 = vrot.lane.b32.xlu0 %v172, 127
      %v209 = vpop.permute.xlu0 %208
      %210 = vrot.lane.b32.xlu0 %v173, 127
      %v211 = vpop.permute.xlu0 %210
      %212 = vrot.lane.b32.xlu0 %v174, 127
      %v213 = vpop.permute.xlu0 %212
      %vm214 = vcmask 1039360
      %v215 = vsel %vm214, %v207, %v209
      %v216 = vsel %vm214, %v211, %v213
      %vm221 = vcmask 130048
      %v223 = vsel %vm221, %v189, 0
      %v226 = vsel %vm221, %v190, 0
      %v229 = vsel %vm221, %v191, 0
      %v232 = vsel %vm221, %v192, 0
      %v235 = vsel %vm221, %v193, 0
      %v238 = vsel %vm221, %v194, 0
      %v241 = vsel %vm221, %v195, 0
      %v244 = vsel %vm221, %v196, 0
      %v247 = vsel %vm221, %v197, 0
      %v250 = vsel %vm221, %v198, 0
      %v253 = vsel %vm221, %v199, 0
      %v256 = vsel %vm221, %v200, 0
      %v259 = vsel %vm221, %v201, 0
      %261 = vmatprep.subr.mxu0 0.0
      %262 = vmatpush1.msra.mxu0 0.0
      %263 = vmatprep.subr.mxu0 0.0
      %264 = vmatpush1.msra.mxu0 0.0
      %265 = vmatprep.subr.mxu0 0.0
      %266 = vmatpush1.msra.mxu0 0.0
      %267 = vmatprep.subr.mxu0 0.0
      %268 = vmatpush1.msra.mxu0 0.0
      %269 = vmatprep.subr.mxu0 0.0
      %270 = vmatpush1.msra.mxu0 0.0
      %271 = vmatprep.subr.mxu0 0.0
      %272 = vmatpush1.msra.mxu0 0.0
      %273 = vmatprep.subr.mxu0 0.0
      %274 = vmatpush1.msra.mxu0 0.0
      %275 = vmatprep.subr.mxu0 0.0
      %276 = vmatpush1.msra.mxu0 0.0
      %277 = vmatprep.subr.mxu0 0.0
      %278 = vmatpush1.msra.mxu0 0.0
      %279 = vmatprep.subr.mxu0 0.0
      %280 = vmatpush1.msra.mxu0 0.0
      %281 = vmatprep.subr.mxu0 0.0
      %282 = vmatpush1.msra.mxu0 0.0
      %283 = vmatprep.subr.mxu0 0.0
      %284 = vmatpush1.msra.mxu0 0.0
      %285 = vmatprep.subr.mxu0 0.0
      %286 = vmatpush1.msra.mxu0 0.0
      %287 = vmatprep.subr.mxu0 0.0
      %288 = vmatpush1.msra.mxu0 0.0
      %289 = vmatprep.subr.mxu0 %v213
      %290 = vmatpush1.msra.mxu0 %v216
      %291 = vmatprep.subr.mxu0 %v209
      %292 = vmatpush1.msra.mxu0 %v215
      %293 = vmatprep.subr.mxu0 0.0
      %294 = vmatpush2.msra.mxu0 0.0
      %295 = vmatprep.subr.mxu0 0.0
      %296 = vmatpush2.msra.mxu0 0.0
      %297 = vmatprep.subr.mxu0 0.0
      %298 = vmatpush2.msra.mxu0 0.0
      %299 = vmatprep.subr.mxu0 0.0
      %300 = vmatpush2.msra.mxu0 0.0
      %301 = vmatprep.subr.mxu0 0.0
      %302 = vmatpush2.msra.mxu0 0.0
      %303 = vmatprep.subr.mxu0 0.0
      %304 = vmatpush2.msra.mxu0 0.0
      %305 = vmatprep.subr.mxu0 0.0
      %306 = vmatpush2.msra.mxu0 0.0
      %307 = vmatprep.subr.mxu0 0.0
      %308 = vmatpush2.msra.mxu0 0.0
      %309 = vmatprep.subr.mxu0 0.0
      %310 = vmatpush2.msra.mxu0 0.0
      %311 = vmatprep.subr.mxu0 0.0
      %312 = vmatpush2.msra.mxu0 0.0
      %313 = vmatprep.subr.mxu0 0.0
      %314 = vmatpush2.msra.mxu0 0.0
      %315 = vmatprep.subr.mxu0 0.0
      %316 = vmatpush2.msra.mxu0 0.0
      %317 = vmatprep.subr.mxu0 0.0
      %318 = vmatpush2.msra.mxu0 0.0
      %319 = vmatprep.subr.mxu0 0.0
      %320 = vmatpush2.msra.mxu0 0.0
      %321 = vmatprep.subr.mxu0 0.0
      %322 = vmatpush2.msra.mxu0 0.0
      %323 = vmatprep.subr.mxu0 0.0
      %324 = vmatpush2.msra.mxu0 0.0
      %325 = vmatprep.mubr.f32.mxu0 0.0
      %326 = vmatmul.mubr.f32.gmra.mxu0 %v223
      %v327 = vpop.f32.mrf.mxu0
      %v328 = vadd.f32 0.0, %v327
      %v329 = vpop.f32.mrf.mxu0
      %v330 = vadd.f32 0.0, %v329
      %331 = vmatprep.mubr.f32.mxu0 0.0
      %332 = vmatmul.mubr.f32.gmra.mxu0 %v226
      %v333 = vpop.f32.mrf.mxu0
      %v334 = vadd.f32 0.0, %v333
      %v335 = vpop.f32.mrf.mxu0
      %v336 = vadd.f32 0.0, %v335
      %337 = vmatprep.mubr.f32.mxu0 0.0
      %338 = vmatmul.mubr.f32.gmra.mxu0 %v229
      %v339 = vpop.f32.mrf.mxu0
      %v340 = vadd.f32 0.0, %v339
      %v341 = vpop.f32.mrf.mxu0
      %v342 = vadd.f32 0.0, %v341
      %343 = vmatprep.mubr.f32.mxu0 0.0
      %344 = vmatmul.mubr.f32.gmra.mxu0 %v232
      %v345 = vpop.f32.mrf.mxu0
      %v346 = vadd.f32 0.0, %v345
      %v347 = vpop.f32.mrf.mxu0
      %v348 = vadd.f32 0.0, %v347
      %349 = vmatprep.mubr.f32.mxu0 0.0
      %350 = vmatmul.mubr.f32.gmra.mxu0 %v235
      %v351 = vpop.f32.mrf.mxu0
      %v352 = vadd.f32 0.0, %v351
      %v353 = vpop.f32.mrf.mxu0
      %v354 = vadd.f32 0.0, %v353
      %355 = vmatprep.mubr.f32.mxu0 0.0
      %356 = vmatmul.mubr.f32.gmra.mxu0 %v238
      %v357 = vpop.f32.mrf.mxu0
      %v358 = vadd.f32 0.0, %v357
      %v359 = vpop.f32.mrf.mxu0
      %v360 = vadd.f32 0.0, %v359
      %361 = vmatprep.mubr.f32.mxu0 0.0
      %362 = vmatmul.mubr.f32.gmra.mxu0 %v241
      %v363 = vpop.f32.mrf.mxu0
      %v364 = vadd.f32 0.0, %v363
      %v365 = vpop.f32.mrf.mxu0
      %v366 = vadd.f32 0.0, %v365
      %367 = vmatprep.mubr.f32.mxu0 0.0
      %368 = vmatmul.mubr.f32.gmra.mxu0 %v244
      %v369 = vpop.f32.mrf.mxu0
      %v370 = vadd.f32 0.0, %v369
      %v371 = vpop.f32.mrf.mxu0
      %v372 = vadd.f32 0.0, %v371
      %373 = vmatprep.mubr.f32.mxu0 0.0
      %374 = vmatmul.mubr.f32.gmra.mxu0 %v247
      %v375 = vpop.f32.mrf.mxu0
      %v376 = vadd.f32 0.0, %v375
      %v377 = vpop.f32.mrf.mxu0
      %v378 = vadd.f32 0.0, %v377
      %379 = vmatprep.mubr.f32.mxu0 0.0
      %380 = vmatmul.mubr.f32.gmra.mxu0 %v250
      %v381 = vpop.f32.mrf.mxu0
      %v382 = vadd.f32 0.0, %v381
      %v383 = vpop.f32.mrf.mxu0
      %v384 = vadd.f32 0.0, %v383
      %385 = vmatprep.mubr.f32.mxu0 0.0
      %386 = vmatmul.mubr.f32.gmra.mxu0 %v253
      %v387 = vpop.f32.mrf.mxu0
      %v388 = vadd.f32 0.0, %v387
      %v389 = vpop.f32.mrf.mxu0
      %v390 = vadd.f32 0.0, %v389
      %391 = vmatprep.mubr.f32.mxu0 0.0
      %392 = vmatmul.mubr.f32.gmra.mxu0 %v256
      %v393 = vpop.f32.mrf.mxu0
      %v394 = vadd.f32 0.0, %v393
      %v395 = vpop.f32.mrf.mxu0
      %v396 = vadd.f32 0.0, %v395
      %397 = vmatprep.mubr.f32.mxu0 0.0
      %398 = vmatmul.mubr.f32.gmra.mxu0 %v259
      %v399 = vpop.f32.mrf.mxu0
      %v400 = vadd.f32 0.0, %v399
      %v401 = vpop.f32.mrf.mxu0
      %v402 = vadd.f32 0.0, %v401
      %403 = vdwg.mxu0
      %v405 = vsel %vm221, %v175, 0
      %v408 = vsel %vm221, %v176, 0
      %v411 = vsel %vm221, %v177, 0
      %v414 = vsel %vm221, %v178, 0
      %v417 = vsel %vm221, %v179, 0
      %v420 = vsel %vm221, %v180, 0
      %v423 = vsel %vm221, %v181, 0
      %v426 = vsel %vm221, %v182, 0
      %v429 = vsel %vm221, %v183, 0
      %v432 = vsel %vm221, %v184, 0
      %v435 = vsel %vm221, %v185, 0
      %v438 = vsel %vm221, %v186, 0
      %v441 = vsel %vm221, %v187, 0
      %443 = vmatprep.subr.mxu0 0.0
      %444 = vmatpush1.msra.mxu0 0.0
      %445 = vmatprep.subr.mxu0 0.0
      %446 = vmatpush1.msra.mxu0 0.0
      %447 = vmatprep.subr.mxu0 0.0
      %448 = vmatpush1.msra.mxu0 0.0
      %449 = vmatprep.subr.mxu0 0.0
      %450 = vmatpush1.msra.mxu0 0.0
      %451 = vmatprep.subr.mxu0 0.0
      %452 = vmatpush1.msra.mxu0 0.0
      %453 = vmatprep.subr.mxu0 0.0
      %454 = vmatpush1.msra.mxu0 0.0
      %455 = vmatprep.subr.mxu0 0.0
      %456 = vmatpush1.msra.mxu0 0.0
      %457 = vmatprep.subr.mxu0 0.0
      %458 = vmatpush1.msra.mxu0 0.0
      %459 = vmatprep.subr.mxu0 0.0
      %460 = vmatpush1.msra.mxu0 0.0
      %461 = vmatprep.subr.mxu0 0.0
      %462 = vmatpush1.msra.mxu0 0.0
      %463 = vmatprep.subr.mxu0 0.0
      %464 = vmatpush1.msra.mxu0 0.0
      %465 = vmatprep.subr.mxu0 0.0
      %466 = vmatpush1.msra.mxu0 0.0
      %467 = vmatprep.subr.mxu0 0.0
      %468 = vmatpush1.msra.mxu0 0.0
      %469 = vmatprep.subr.mxu0 0.0
      %470 = vmatpush1.msra.mxu0 0.0
      %471 = vmatprep.subr.mxu0 %v174
      %472 = vmatpush1.msra.mxu0 %v173
      %473 = vmatprep.subr.mxu0 %v172
      %474 = vmatpush1.msra.mxu0 %v171
      %475 = vmatprep.subr.mxu0 0.0
      %476 = vmatpush2.msra.mxu0 0.0
      %477 = vmatprep.subr.mxu0 0.0
      %478 = vmatpush2.msra.mxu0 0.0
      %479 = vmatprep.subr.mxu0 0.0
      %480 = vmatpush2.msra.mxu0 0.0
      %481 = vmatprep.subr.mxu0 0.0
      %482 = vmatpush2.msra.mxu0 0.0
      %483 = vmatprep.subr.mxu0 0.0
      %484 = vmatpush2.msra.mxu0 0.0
      %485 = vmatprep.subr.mxu0 0.0
      %486 = vmatpush2.msra.mxu0 0.0
      %487 = vmatprep.subr.mxu0 0.0
      %488 = vmatpush2.msra.mxu0 0.0
      %489 = vmatprep.subr.mxu0 0.0
      %490 = vmatpush2.msra.mxu0 0.0
      %491 = vmatprep.subr.mxu0 0.0
      %492 = vmatpush2.msra.mxu0 0.0
      %493 = vmatprep.subr.mxu0 0.0
      %494 = vmatpush2.msra.mxu0 0.0
      %495 = vmatprep.subr.mxu0 0.0
      %496 = vmatpush2.msra.mxu0 0.0
      %497 = vmatprep.subr.mxu0 0.0
      %498 = vmatpush2.msra.mxu0 0.0
      %499 = vmatprep.subr.mxu0 0.0
      %500 = vmatpush2.msra.mxu0 0.0
      %501 = vmatprep.subr.mxu0 0.0
      %502 = vmatpush2.msra.mxu0 0.0
      %503 = vmatprep.subr.mxu0 0.0
      %504 = vmatpush2.msra.mxu0 0.0
      %505 = vmatprep.subr.mxu0 0.0
      %506 = vmatpush2.msra.mxu0 0.0
      %507 = vmatprep.mubr.f32.mxu0 0.0
      %508 = vmatmul.mubr.f32.gmra.mxu0 %v405
      %v509 = vpop.f32.mrf.mxu0
      %v510 = vadd.f32 %v328, %v509
      %v511 = vpop.f32.mrf.mxu0
      %v512 = vadd.f32 %v330, %v511
      %513 = vmatprep.mubr.f32.mxu0 0.0
      %514 = vmatmul.mubr.f32.gmra.mxu0 %v408
      %v515 = vpop.f32.mrf.mxu0
      %v516 = vadd.f32 %v334, %v515
      %v517 = vpop.f32.mrf.mxu0
      %v518 = vadd.f32 %v336, %v517
      %519 = vmatprep.mubr.f32.mxu0 0.0
      %520 = vmatmul.mubr.f32.gmra.mxu0 %v411
      %v521 = vpop.f32.mrf.mxu0
      %v522 = vadd.f32 %v340, %v521
      %v523 = vpop.f32.mrf.mxu0
      %v524 = vadd.f32 %v342, %v523
      %525 = vmatprep.mubr.f32.mxu0 0.0
      %526 = vmatmul.mubr.f32.gmra.mxu0 %v414
      %v527 = vpop.f32.mrf.mxu0
      %v528 = vadd.f32 %v346, %v527
      %v529 = vpop.f32.mrf.mxu0
      %v530 = vadd.f32 %v348, %v529
      %531 = vmatprep.mubr.f32.mxu0 0.0
      %532 = vmatmul.mubr.f32.gmra.mxu0 %v417
      %v533 = vpop.f32.mrf.mxu0
      %v534 = vadd.f32 %v352, %v533
      %v535 = vpop.f32.mrf.mxu0
      %v536 = vadd.f32 %v354, %v535
      %537 = vmatprep.mubr.f32.mxu0 0.0
      %538 = vmatmul.mubr.f32.gmra.mxu0 %v420
      %v539 = vpop.f32.mrf.mxu0
      %v540 = vadd.f32 %v358, %v539
      %v541 = vpop.f32.mrf.mxu0
      %v542 = vadd.f32 %v360, %v541
      %543 = vmatprep.mubr.f32.mxu0 0.0
      %544 = vmatmul.mubr.f32.gmra.mxu0 %v423
      %v545 = vpop.f32.mrf.mxu0
      %v546 = vadd.f32 %v364, %v545
      %v547 = vpop.f32.mrf.mxu0
      %v548 = vadd.f32 %v366, %v547
      %549 = vmatprep.mubr.f32.mxu0 0.0
      %550 = vmatmul.mubr.f32.gmra.mxu0 %v426
      %v551 = vpop.f32.mrf.mxu0
      %v552 = vadd.f32 %v370, %v551
      %v553 = vpop.f32.mrf.mxu0
      %v554 = vadd.f32 %v372, %v553
      %555 = vmatprep.mubr.f32.mxu0 0.0
      %556 = vmatmul.mubr.f32.gmra.mxu0 %v429
      %v557 = vpop.f32.mrf.mxu0
      %v558 = vadd.f32 %v376, %v557
      %v559 = vpop.f32.mrf.mxu0
      %v560 = vadd.f32 %v378, %v559
      %561 = vmatprep.mubr.f32.mxu0 0.0
      %562 = vmatmul.mubr.f32.gmra.mxu0 %v432
      %v563 = vpop.f32.mrf.mxu0
      %v564 = vadd.f32 %v382, %v563
      %v565 = vpop.f32.mrf.mxu0
      %v566 = vadd.f32 %v384, %v565
      %567 = vmatprep.mubr.f32.mxu0 0.0
      %568 = vmatmul.mubr.f32.gmra.mxu0 %v435
      %v569 = vpop.f32.mrf.mxu0
      %v570 = vadd.f32 %v388, %v569
      %v571 = vpop.f32.mrf.mxu0
      %v572 = vadd.f32 %v390, %v571
      %573 = vmatprep.mubr.f32.mxu0 0.0
      %574 = vmatmul.mubr.f32.gmra.mxu0 %v438
      %v575 = vpop.f32.mrf.mxu0
      %v576 = vadd.f32 %v394, %v575
      %v577 = vpop.f32.mrf.mxu0
      %v578 = vadd.f32 %v396, %v577
      %579 = vmatprep.mubr.f32.mxu0 0.0
      %580 = vmatmul.mubr.f32.gmra.mxu0 %v441
      %v581 = vpop.f32.mrf.mxu0
      %v582 = vadd.f32 %v400, %v581
      %v583 = vpop.f32.mrf.mxu0
      %v584 = vadd.f32 %v402, %v583
      %585 = vdwg.mxu0
      %s586 = scalar_lea.vmem %s1, 208
      %v587 = vld [vmem:[%s586] sm:$0xff]
      %v588 = vld [vmem:[%s586 + $0x8] sm:$0xff]
      %v589 = vld [vmem:[%s586 + $0x10] sm:$0xff]
      %v590 = vld [vmem:[%s586 + $0x18] sm:$0xff]
      %v591 = vld [vmem:[%s586 + $0x20] sm:$0xff]
      %v592 = vld [vmem:[%s586 + $0x28] sm:$0xff]
      %v593 = vld [vmem:[%s586 + $0x30] sm:$0xff]
      %v594 = vld [vmem:[%s586 + $0x38] sm:$0xff]
      %v595 = vld [vmem:[%s586 + $0x40] sm:$0xff]
      %v596 = vld [vmem:[%s586 + $0x48] sm:$0xff]
      %v597 = vld [vmem:[%s586 + $0x50] sm:$0xff]
      %v598 = vld [vmem:[%s586 + $0x58] sm:$0xff]
      %v599 = vld [vmem:[%s586 + $0x60] sm:$0xf]
      %600 = vrot.lane.b32.xlu0 %v171, 126
      %v601 = vpop.permute.xlu0 %600
      %602 = vrot.lane.b32.xlu0 %v172, 126
      %v603 = vpop.permute.xlu0 %602
      %604 = vrot.lane.b32.xlu0 %v173, 126
      %v605 = vpop.permute.xlu0 %604
      %606 = vrot.lane.b32.xlu0 %v174, 126
      %v607 = vpop.permute.xlu0 %606
      %vm608 = vcmask 1031168
      %v609 = vsel %vm608, %v601, %v603
      %v610 = vsel %vm608, %v605, %v607
      %v616 = vsel %vm221, %v587, 0
      %v619 = vsel %vm221, %v588, 0
      %v622 = vsel %vm221, %v589, 0
      %v625 = vsel %vm221, %v590, 0
      %v628 = vsel %vm221, %v591, 0
      %v631 = vsel %vm221, %v592, 0
      %v634 = vsel %vm221, %v593, 0
      %v637 = vsel %vm221, %v594, 0
      %v640 = vsel %vm221, %v595, 0
      %v643 = vsel %vm221, %v596, 0
      %v646 = vsel %vm221, %v597, 0
      %v649 = vsel %vm221, %v598, 0
      %v652 = vsel %vm221, %v599, 0
      %654 = vmatprep.subr.mxu0 0.0
      %655 = vmatpush1.msra.mxu0 0.0
      %656 = vmatprep.subr.mxu0 0.0
      %657 = vmatpush1.msra.mxu0 0.0
      %658 = vmatprep.subr.mxu0 0.0
      %659 = vmatpush1.msra.mxu0 0.0
      %660 = vmatprep.subr.mxu0 0.0
      %661 = vmatpush1.msra.mxu0 0.0
      %662 = vmatprep.subr.mxu0 0.0
      %663 = vmatpush1.msra.mxu0 0.0
      %664 = vmatprep.subr.mxu0 0.0
      %665 = vmatpush1.msra.mxu0 0.0
      %666 = vmatprep.subr.mxu0 0.0
      %667 = vmatpush1.msra.mxu0 0.0
      %668 = vmatprep.subr.mxu0 0.0
      %669 = vmatpush1.msra.mxu0 0.0
      %670 = vmatprep.subr.mxu0 0.0
      %671 = vmatpush1.msra.mxu0 0.0
      %672 = vmatprep.subr.mxu0 0.0
      %673 = vmatpush1.msra.mxu0 0.0
      %674 = vmatprep.subr.mxu0 0.0
      %675 = vmatpush1.msra.mxu0 0.0
      %676 = vmatprep.subr.mxu0 0.0
      %677 = vmatpush1.msra.mxu0 0.0
      %678 = vmatprep.subr.mxu0 0.0
      %679 = vmatpush1.msra.mxu0 0.0
      %680 = vmatprep.subr.mxu0 0.0
      %681 = vmatpush1.msra.mxu0 0.0
      %682 = vmatprep.subr.mxu0 %v607
      %683 = vmatpush1.msra.mxu0 %v610
      %684 = vmatprep.subr.mxu0 %v603
      %685 = vmatpush1.msra.mxu0 %v609
      %686 = vmatprep.subr.mxu0 0.0
      %687 = vmatpush2.msra.mxu0 0.0
      %688 = vmatprep.subr.mxu0 0.0
      %689 = vmatpush2.msra.mxu0 0.0
      %690 = vmatprep.subr.mxu0 0.0
      %691 = vmatpush2.msra.mxu0 0.0
      %692 = vmatprep.subr.mxu0 0.0
      %693 = vmatpush2.msra.mxu0 0.0
      %694 = vmatprep.subr.mxu0 0.0
      %695 = vmatpush2.msra.mxu0 0.0
      %696 = vmatprep.subr.mxu0 0.0
      %697 = vmatpush2.msra.mxu0 0.0
      %698 = vmatprep.subr.mxu0 0.0
      %699 = vmatpush2.msra.mxu0 0.0
      %700 = vmatprep.subr.mxu0 0.0
      %701 = vmatpush2.msra.mxu0 0.0
      %702 = vmatprep.subr.mxu0 0.0
      %703 = vmatpush2.msra.mxu0 0.0
      %704 = vmatprep.subr.mxu0 0.0
      %705 = vmatpush2.msra.mxu0 0.0
      %706 = vmatprep.subr.mxu0 0.0
      %707 = vmatpush2.msra.mxu0 0.0
      %708 = vmatprep.subr.mxu0 0.0
      %709 = vmatpush2.msra.mxu0 0.0
      %710 = vmatprep.subr.mxu0 0.0
      %711 = vmatpush2.msra.mxu0 0.0
      %712 = vmatprep.subr.mxu0 0.0
      %713 = vmatpush2.msra.mxu0 0.0
      %714 = vmatprep.subr.mxu0 0.0
      %715 = vmatpush2.msra.mxu0 0.0
      %716 = vmatprep.subr.mxu0 0.0
      %717 = vmatpush2.msra.mxu0 0.0
      %718 = vmatprep.mubr.f32.mxu0 0.0
      %719 = vmatmul.mubr.f32.gmra.mxu0 %v616
      %v720 = vpop.f32.mrf.mxu0
      %v721 = vadd.f32 0.0, %v720
      %v722 = vpop.f32.mrf.mxu0
      %v723 = vadd.f32 0.0, %v722
      %724 = vmatprep.mubr.f32.mxu0 0.0
      %725 = vmatmul.mubr.f32.gmra.mxu0 %v619
      %v726 = vpop.f32.mrf.mxu0
      %v727 = vadd.f32 0.0, %v726
      %v728 = vpop.f32.mrf.mxu0
      %v729 = vadd.f32 0.0, %v728
      %730 = vmatprep.mubr.f32.mxu0 0.0
      %731 = vmatmul.mubr.f32.gmra.mxu0 %v622
      %v732 = vpop.f32.mrf.mxu0
      %v733 = vadd.f32 0.0, %v732
      %v734 = vpop.f32.mrf.mxu0
      %v735 = vadd.f32 0.0, %v734
      %736 = vmatprep.mubr.f32.mxu0 0.0
      %737 = vmatmul.mubr.f32.gmra.mxu0 %v625
      %v738 = vpop.f32.mrf.mxu0
      %v739 = vadd.f32 0.0, %v738
      %v740 = vpop.f32.mrf.mxu0
      %v741 = vadd.f32 0.0, %v740
      %742 = vmatprep.mubr.f32.mxu0 0.0
      %743 = vmatmul.mubr.f32.gmra.mxu0 %v628
      %v744 = vpop.f32.mrf.mxu0
      %v745 = vadd.f32 0.0, %v744
      %v746 = vpop.f32.mrf.mxu0
      %v747 = vadd.f32 0.0, %v746
      %748 = vmatprep.mubr.f32.mxu0 0.0
      %749 = vmatmul.mubr.f32.gmra.mxu0 %v631
      %v750 = vpop.f32.mrf.mxu0
      %v751 = vadd.f32 0.0, %v750
      %v752 = vpop.f32.mrf.mxu0
      %v753 = vadd.f32 0.0, %v752
      %754 = vmatprep.mubr.f32.mxu0 0.0
      %755 = vmatmul.mubr.f32.gmra.mxu0 %v634
      %v756 = vpop.f32.mrf.mxu0
      %v757 = vadd.f32 0.0, %v756
      %v758 = vpop.f32.mrf.mxu0
      %v759 = vadd.f32 0.0, %v758
      %760 = vmatprep.mubr.f32.mxu0 0.0
      %761 = vmatmul.mubr.f32.gmra.mxu0 %v637
      %v762 = vpop.f32.mrf.mxu0
      %v763 = vadd.f32 0.0, %v762
      %v764 = vpop.f32.mrf.mxu0
      %v765 = vadd.f32 0.0, %v764
      %766 = vmatprep.mubr.f32.mxu0 0.0
      %767 = vmatmul.mubr.f32.gmra.mxu0 %v640
      %v768 = vpop.f32.mrf.mxu0
      %v769 = vadd.f32 0.0, %v768
      %v770 = vpop.f32.mrf.mxu0
      %v771 = vadd.f32 0.0, %v770
      %772 = vmatprep.mubr.f32.mxu0 0.0
      %773 = vmatmul.mubr.f32.gmra.mxu0 %v643
      %v774 = vpop.f32.mrf.mxu0
      %v775 = vadd.f32 0.0, %v774
      %v776 = vpop.f32.mrf.mxu0
      %v777 = vadd.f32 0.0, %v776
      %778 = vmatprep.mubr.f32.mxu0 0.0
      %779 = vmatmul.mubr.f32.gmra.mxu0 %v646
      %v780 = vpop.f32.mrf.mxu0
      %v781 = vadd.f32 0.0, %v780
      %v782 = vpop.f32.mrf.mxu0
      %v783 = vadd.f32 0.0, %v782
      %784 = vmatprep.mubr.f32.mxu0 0.0
      %785 = vmatmul.mubr.f32.gmra.mxu0 %v649
      %v786 = vpop.f32.mrf.mxu0
      %v787 = vadd.f32 0.0, %v786
      %v788 = vpop.f32.mrf.mxu0
      %v789 = vadd.f32 0.0, %v788
      %790 = vmatprep.mubr.f32.mxu0 0.0
      %791 = vmatmul.mubr.f32.gmra.mxu0 %v652
      %v792 = vpop.f32.mrf.mxu0
      %v793 = vadd.f32 0.0, %v792
      %v794 = vpop.f32.mrf.mxu0
      %v795 = vadd.f32 0.0, %v794
      %796 = vdwg.mxu0
      %v797 = vadd.f32 %v510, %v721
      %v798 = vadd.f32 %v512, %v723
      %v799 = vadd.f32 %v516, %v727
      %v800 = vadd.f32 %v518, %v729
      %v801 = vadd.f32 %v522, %v733
      %v802 = vadd.f32 %v524, %v735
      %v803 = vadd.f32 %v528, %v739
      %v804 = vadd.f32 %v530, %v741
      %v805 = vadd.f32 %v534, %v745
      %v806 = vadd.f32 %v536, %v747
      %v807 = vadd.f32 %v540, %v751
      %v808 = vadd.f32 %v542, %v753
      %v809 = vadd.f32 %v546, %v757
      %v810 = vadd.f32 %v548, %v759
      %v811 = vadd.f32 %v552, %v763
      %v812 = vadd.f32 %v554, %v765
      %v813 = vadd.f32 %v558, %v769
      %v814 = vadd.f32 %v560, %v771
      %v815 = vadd.f32 %v564, %v775
      %v816 = vadd.f32 %v566, %v777
      %v817 = vadd.f32 %v570, %v781
      %v818 = vadd.f32 %v572, %v783
      %v819 = vadd.f32 %v576, %v787
      %v820 = vadd.f32 %v578, %v789
      %v821 = vadd.f32 %v582, %v793
      %v822 = vadd.f32 %v584, %v795
      %s823 = scalar_lea.vmem %s1, 312
      %v824 = vld [vmem:[%s823] sm:$0xff]
      %v825 = vld [vmem:[%s823 + $0x8] sm:$0xff]
      %v826 = vld [vmem:[%s823 + $0x10] sm:$0xff]
      %v827 = vld [vmem:[%s823 + $0x18] sm:$0xff]
      %v828 = vld [vmem:[%s823 + $0x20] sm:$0xff]
      %v829 = vld [vmem:[%s823 + $0x28] sm:$0xff]
      %v830 = vld [vmem:[%s823 + $0x30] sm:$0xff]
      %v831 = vld [vmem:[%s823 + $0x38] sm:$0xff]
      %v832 = vld [vmem:[%s823 + $0x40] sm:$0xff]
      %v833 = vld [vmem:[%s823 + $0x48] sm:$0xff]
      %v834 = vld [vmem:[%s823 + $0x50] sm:$0xff]
      %v835 = vld [vmem:[%s823 + $0x58] sm:$0xff]
      %v836 = vld [vmem:[%s823 + $0x60] sm:$0xf]
      %837 = vrot.lane.b32.xlu0 %v171, 112
      %v838 = vpop.permute.xlu0 %837
      %839 = vrot.lane.b32.xlu0 %v172, 112
      %v840 = vpop.permute.xlu0 %839
      %841 = vrot.lane.b32.xlu0 %v173, 112
      %v842 = vpop.permute.xlu0 %841
      %843 = vrot.lane.b32.xlu0 %v174, 112
      %v844 = vpop.permute.xlu0 %843
      %vm845 = vcmask 916480
      %v846 = vsel %vm845, %v838, %v840
      %v847 = vsel %vm845, %v842, %v844
      %v853 = vsel %vm221, %v824, 0
      %v856 = vsel %vm221, %v825, 0
      %v859 = vsel %vm221, %v826, 0
      %v862 = vsel %vm221, %v827, 0
      %v865 = vsel %vm221, %v828, 0
      %v868 = vsel %vm221, %v829, 0
      %v871 = vsel %vm221, %v830, 0
      %v874 = vsel %vm221, %v831, 0
      %v877 = vsel %vm221, %v832, 0
      %v880 = vsel %vm221, %v833, 0
      %v883 = vsel %vm221, %v834, 0
      %v886 = vsel %vm221, %v835, 0
      %v889 = vsel %vm221, %v836, 0
      %891 = vmatprep.subr.mxu0 0.0
      %892 = vmatpush1.msra.mxu0 0.0
      %893 = vmatprep.subr.mxu0 0.0
      %894 = vmatpush1.msra.mxu0 0.0
      %895 = vmatprep.subr.mxu0 0.0
      %896 = vmatpush1.msra.mxu0 0.0
      %897 = vmatprep.subr.mxu0 0.0
      %898 = vmatpush1.msra.mxu0 0.0
      %899 = vmatprep.subr.mxu0 0.0
      %900 = vmatpush1.msra.mxu0 0.0
      %901 = vmatprep.subr.mxu0 0.0
      %902 = vmatpush1.msra.mxu0 0.0
      %903 = vmatprep.subr.mxu0 0.0
      %904 = vmatpush1.msra.mxu0 0.0
      %905 = vmatprep.subr.mxu0 0.0
      %906 = vmatpush1.msra.mxu0 0.0
      %907 = vmatprep.subr.mxu0 0.0
      %908 = vmatpush1.msra.mxu0 0.0
      %909 = vmatprep.subr.mxu0 0.0
      %910 = vmatpush1.msra.mxu0 0.0
      %911 = vmatprep.subr.mxu0 0.0
      %912 = vmatpush1.msra.mxu0 0.0
      %913 = vmatprep.subr.mxu0 0.0
      %914 = vmatpush1.msra.mxu0 0.0
      %915 = vmatprep.subr.mxu0 0.0
      %916 = vmatpush1.msra.mxu0 0.0
      %917 = vmatprep.subr.mxu0 0.0
      %918 = vmatpush1.msra.mxu0 0.0
      %919 = vmatprep.subr.mxu0 %v844
      %920 = vmatpush1.msra.mxu0 %v847
      %921 = vmatprep.subr.mxu0 %v840
      %922 = vmatpush1.msra.mxu0 %v846
      %923 = vmatprep.subr.mxu0 0.0
      %924 = vmatpush2.msra.mxu0 0.0
      %925 = vmatprep.subr.mxu0 0.0
      %926 = vmatpush2.msra.mxu0 0.0
      %927 = vmatprep.subr.mxu0 0.0
      %928 = vmatpush2.msra.mxu0 0.0
      %929 = vmatprep.subr.mxu0 0.0
      %930 = vmatpush2.msra.mxu0 0.0
      %931 = vmatprep.subr.mxu0 0.0
      %932 = vmatpush2.msra.mxu0 0.0
      %933 = vmatprep.subr.mxu0 0.0
      %934 = vmatpush2.msra.mxu0 0.0
      %935 = vmatprep.subr.mxu0 0.0
      %936 = vmatpush2.msra.mxu0 0.0
      %937 = vmatprep.subr.mxu0 0.0
      %938 = vmatpush2.msra.mxu0 0.0
      %939 = vmatprep.subr.mxu0 0.0
      %940 = vmatpush2.msra.mxu0 0.0
      %941 = vmatprep.subr.mxu0 0.0
      %942 = vmatpush2.msra.mxu0 0.0
      %943 = vmatprep.subr.mxu0 0.0
      %944 = vmatpush2.msra.mxu0 0.0
      %945 = vmatprep.subr.mxu0 0.0
      %946 = vmatpush2.msra.mxu0 0.0
      %947 = vmatprep.subr.mxu0 0.0
      %948 = vmatpush2.msra.mxu0 0.0
      %949 = vmatprep.subr.mxu0 0.0
      %950 = vmatpush2.msra.mxu0 0.0
      %951 = vmatprep.subr.mxu0 0.0
      %952 = vmatpush2.msra.mxu0 0.0
      %953 = vmatprep.subr.mxu0 0.0
      %954 = vmatpush2.msra.mxu0 0.0
      %955 = vmatprep.mubr.f32.mxu0 0.0
      %956 = vmatmul.mubr.f32.gmra.mxu0 %v853
      %v957 = vpop.f32.mrf.mxu0
      %v958 = vadd.f32 0.0, %v957
      %v959 = vpop.f32.mrf.mxu0
      %v960 = vadd.f32 0.0, %v959
      %961 = vmatprep.mubr.f32.mxu0 0.0
      %962 = vmatmul.mubr.f32.gmra.mxu0 %v856
      %v963 = vpop.f32.mrf.mxu0
      %v964 = vadd.f32 0.0, %v963
      %v965 = vpop.f32.mrf.mxu0
      %v966 = vadd.f32 0.0, %v965
      %967 = vmatprep.mubr.f32.mxu0 0.0
      %968 = vmatmul.mubr.f32.gmra.mxu0 %v859
      %v969 = vpop.f32.mrf.mxu0
      %v970 = vadd.f32 0.0, %v969
      %v971 = vpop.f32.mrf.mxu0
      %v972 = vadd.f32 0.0, %v971
      %973 = vmatprep.mubr.f32.mxu0 0.0
      %974 = vmatmul.mubr.f32.gmra.mxu0 %v862
      %v975 = vpop.f32.mrf.mxu0
      %v976 = vadd.f32 0.0, %v975
      %v977 = vpop.f32.mrf.mxu0
      %v978 = vadd.f32 0.0, %v977
      %979 = vmatprep.mubr.f32.mxu0 0.0
      %980 = vmatmul.mubr.f32.gmra.mxu0 %v865
      %v981 = vpop.f32.mrf.mxu0
      %v982 = vadd.f32 0.0, %v981
      %v983 = vpop.f32.mrf.mxu0
      %v984 = vadd.f32 0.0, %v983
      %985 = vmatprep.mubr.f32.mxu0 0.0
      %986 = vmatmul.mubr.f32.gmra.mxu0 %v868
      %v987 = vpop.f32.mrf.mxu0
      %v988 = vadd.f32 0.0, %v987
      %v989 = vpop.f32.mrf.mxu0
      %v990 = vadd.f32 0.0, %v989
      %991 = vmatprep.mubr.f32.mxu0 0.0
      %992 = vmatmul.mubr.f32.gmra.mxu0 %v871
      %v993 = vpop.f32.mrf.mxu0
      %v994 = vadd.f32 0.0, %v993
      %v995 = vpop.f32.mrf.mxu0
      %v996 = vadd.f32 0.0, %v995
      %997 = vmatprep.mubr.f32.mxu0 0.0
      %998 = vmatmul.mubr.f32.gmra.mxu0 %v874
      %v999 = vpop.f32.mrf.mxu0
      %v1000 = vadd.f32 0.0, %v999
      %v1001 = vpop.f32.mrf.mxu0
      %v1002 = vadd.f32 0.0, %v1001
      %1003 = vmatprep.mubr.f32.mxu0 0.0
      %1004 = vmatmul.mubr.f32.gmra.mxu0 %v877
      %v1005 = vpop.f32.mrf.mxu0
      %v1006 = vadd.f32 0.0, %v1005
      %v1007 = vpop.f32.mrf.mxu0
      %v1008 = vadd.f32 0.0, %v1007
      %1009 = vmatprep.mubr.f32.mxu0 0.0
      %1010 = vmatmul.mubr.f32.gmra.mxu0 %v880
      %v1011 = vpop.f32.mrf.mxu0
      %v1012 = vadd.f32 0.0, %v1011
      %v1013 = vpop.f32.mrf.mxu0
      %v1014 = vadd.f32 0.0, %v1013
      %1015 = vmatprep.mubr.f32.mxu0 0.0
      %1016 = vmatmul.mubr.f32.gmra.mxu0 %v883
      %v1017 = vpop.f32.mrf.mxu0
      %v1018 = vadd.f32 0.0, %v1017
      %v1019 = vpop.f32.mrf.mxu0
      %v1020 = vadd.f32 0.0, %v1019
      %1021 = vmatprep.mubr.f32.mxu0 0.0
      %1022 = vmatmul.mubr.f32.gmra.mxu0 %v886
      %v1023 = vpop.f32.mrf.mxu0
      %v1024 = vadd.f32 0.0, %v1023
      %v1025 = vpop.f32.mrf.mxu0
      %v1026 = vadd.f32 0.0, %v1025
      %1027 = vmatprep.mubr.f32.mxu0 0.0
      %1028 = vmatmul.mubr.f32.gmra.mxu0 %v889
      %v1029 = vpop.f32.mrf.mxu0
      %v1030 = vadd.f32 0.0, %v1029
      %v1031 = vpop.f32.mrf.mxu0
      %v1032 = vadd.f32 0.0, %v1031
      %1033 = vdwg.mxu0
      %v1034 = vadd.f32 %v797, %v958
      %v1035 = vadd.f32 %v798, %v960
      %v1036 = vadd.f32 %v799, %v964
      %v1037 = vadd.f32 %v800, %v966
      %v1038 = vadd.f32 %v801, %v970
      %v1039 = vadd.f32 %v802, %v972
      %v1040 = vadd.f32 %v803, %v976
      %v1041 = vadd.f32 %v804, %v978
      %v1042 = vadd.f32 %v805, %v982
      %v1043 = vadd.f32 %v806, %v984
      %v1044 = vadd.f32 %v807, %v988
      %v1045 = vadd.f32 %v808, %v990
      %v1046 = vadd.f32 %v809, %v994
      %v1047 = vadd.f32 %v810, %v996
      %v1048 = vadd.f32 %v811, %v1000
      %v1049 = vadd.f32 %v812, %v1002
      %v1050 = vadd.f32 %v813, %v1006
      %v1051 = vadd.f32 %v814, %v1008
      %v1052 = vadd.f32 %v815, %v1012
      %v1053 = vadd.f32 %v816, %v1014
      %v1054 = vadd.f32 %v817, %v1018
      %v1055 = vadd.f32 %v818, %v1020
      %v1056 = vadd.f32 %v819, %v1024
      %v1057 = vadd.f32 %v820, %v1026
      %v1058 = vadd.f32 %v821, %v1030
      %v1059 = vadd.f32 %v822, %v1032
      %s1060 = scalar_lea.vmem %s1, 416
      %v1061 = vld [vmem:[%s1060] sm:$0xff]
      %v1062 = vld [vmem:[%s1060 + $0x8] sm:$0xff]
      %v1063 = vld [vmem:[%s1060 + $0x10] sm:$0xff]
      %v1064 = vld [vmem:[%s1060 + $0x18] sm:$0xff]
      %v1065 = vld [vmem:[%s1060 + $0x20] sm:$0xff]
      %v1066 = vld [vmem:[%s1060 + $0x28] sm:$0xff]
      %v1067 = vld [vmem:[%s1060 + $0x30] sm:$0xff]
      %v1068 = vld [vmem:[%s1060 + $0x38] sm:$0xff]
      %v1069 = vld [vmem:[%s1060 + $0x40] sm:$0xff]
      %v1070 = vld [vmem:[%s1060 + $0x48] sm:$0xff]
      %v1071 = vld [vmem:[%s1060 + $0x50] sm:$0xff]
      %v1072 = vld [vmem:[%s1060 + $0x58] sm:$0xff]
      %v1073 = vld [vmem:[%s1060 + $0x60] sm:$0xf]
      %1074 = vrot.lane.b32.xlu0 %v171, 111
      %v1075 = vpop.permute.xlu0 %1074
      %1076 = vrot.lane.b32.xlu0 %v172, 111
      %v1077 = vpop.permute.xlu0 %1076
      %1078 = vrot.lane.b32.xlu0 %v173, 111
      %v1079 = vpop.permute.xlu0 %1078
      %1080 = vrot.lane.b32.xlu0 %v174, 111
      %v1081 = vpop.permute.xlu0 %1080
      %vm1082 = vcmask 908288
      %v1083 = vsel %vm1082, %v1075, %v1077
      %v1084 = vsel %vm1082, %v1079, %v1081
      %v1090 = vsel %vm221, %v1061, 0
      %v1093 = vsel %vm221, %v1062, 0
      %v1096 = vsel %vm221, %v1063, 0
      %v1099 = vsel %vm221, %v1064, 0
      %v1102 = vsel %vm221, %v1065, 0
      %v1105 = vsel %vm221, %v1066, 0
      %v1108 = vsel %vm221, %v1067, 0
      %v1111 = vsel %vm221, %v1068, 0
      %v1114 = vsel %vm221, %v1069, 0
      %v1117 = vsel %vm221, %v1070, 0
      %v1120 = vsel %vm221, %v1071, 0
      %v1123 = vsel %vm221, %v1072, 0
      %v1126 = vsel %vm221, %v1073, 0
      %1128 = vmatprep.subr.mxu0 0.0
      %1129 = vmatpush1.msra.mxu0 0.0
      %1130 = vmatprep.subr.mxu0 0.0
      %1131 = vmatpush1.msra.mxu0 0.0
      %1132 = vmatprep.subr.mxu0 0.0
      %1133 = vmatpush1.msra.mxu0 0.0
      %1134 = vmatprep.subr.mxu0 0.0
      %1135 = vmatpush1.msra.mxu0 0.0
      %1136 = vmatprep.subr.mxu0 0.0
      %1137 = vmatpush1.msra.mxu0 0.0
      %1138 = vmatprep.subr.mxu0 0.0
      %1139 = vmatpush1.msra.mxu0 0.0
      %1140 = vmatprep.subr.mxu0 0.0
      %1141 = vmatpush1.msra.mxu0 0.0
      %1142 = vmatprep.subr.mxu0 0.0
      %1143 = vmatpush1.msra.mxu0 0.0
      %1144 = vmatprep.subr.mxu0 0.0
      %1145 = vmatpush1.msra.mxu0 0.0
      %1146 = vmatprep.subr.mxu0 0.0
      %1147 = vmatpush1.msra.mxu0 0.0
      %1148 = vmatprep.subr.mxu0 0.0
      %1149 = vmatpush1.msra.mxu0 0.0
      %1150 = vmatprep.subr.mxu0 0.0
      %1151 = vmatpush1.msra.mxu0 0.0
      %1152 = vmatprep.subr.mxu0 0.0
      %1153 = vmatpush1.msra.mxu0 0.0
      %1154 = vmatprep.subr.mxu0 0.0
      %1155 = vmatpush1.msra.mxu0 0.0
      %1156 = vmatprep.subr.mxu0 %v1081
      %1157 = vmatpush1.msra.mxu0 %v1084
      %1158 = vmatprep.subr.mxu0 %v1077
      %1159 = vmatpush1.msra.mxu0 %v1083
      %1160 = vmatprep.subr.mxu0 0.0
      %1161 = vmatpush2.msra.mxu0 0.0
      %1162 = vmatprep.subr.mxu0 0.0
      %1163 = vmatpush2.msra.mxu0 0.0
      %1164 = vmatprep.subr.mxu0 0.0
      %1165 = vmatpush2.msra.mxu0 0.0
      %1166 = vmatprep.subr.mxu0 0.0
      %1167 = vmatpush2.msra.mxu0 0.0
      %1168 = vmatprep.subr.mxu0 0.0
      %1169 = vmatpush2.msra.mxu0 0.0
      %1170 = vmatprep.subr.mxu0 0.0
      %1171 = vmatpush2.msra.mxu0 0.0
      %1172 = vmatprep.subr.mxu0 0.0
      %1173 = vmatpush2.msra.mxu0 0.0
      %1174 = vmatprep.subr.mxu0 0.0
      %1175 = vmatpush2.msra.mxu0 0.0
      %1176 = vmatprep.subr.mxu0 0.0
      %1177 = vmatpush2.msra.mxu0 0.0
      %1178 = vmatprep.subr.mxu0 0.0
      %1179 = vmatpush2.msra.mxu0 0.0
      %1180 = vmatprep.subr.mxu0 0.0
      %1181 = vmatpush2.msra.mxu0 0.0
      %1182 = vmatprep.subr.mxu0 0.0
      %1183 = vmatpush2.msra.mxu0 0.0
      %1184 = vmatprep.subr.mxu0 0.0
      %1185 = vmatpush2.msra.mxu0 0.0
      %1186 = vmatprep.subr.mxu0 0.0
      %1187 = vmatpush2.msra.mxu0 0.0
      %1188 = vmatprep.subr.mxu0 0.0
      %1189 = vmatpush2.msra.mxu0 0.0
      %1190 = vmatprep.subr.mxu0 0.0
      %1191 = vmatpush2.msra.mxu0 0.0
      %1192 = vmatprep.mubr.f32.mxu0 0.0
      %1193 = vmatmul.mubr.f32.gmra.mxu0 %v1090
      %v1194 = vpop.f32.mrf.mxu0
      %v1195 = vadd.f32 0.0, %v1194
      %v1196 = vpop.f32.mrf.mxu0
      %v1197 = vadd.f32 0.0, %v1196
      %1198 = vmatprep.mubr.f32.mxu0 0.0
      %1199 = vmatmul.mubr.f32.gmra.mxu0 %v1093
      %v1200 = vpop.f32.mrf.mxu0
      %v1201 = vadd.f32 0.0, %v1200
      %v1202 = vpop.f32.mrf.mxu0
      %v1203 = vadd.f32 0.0, %v1202
      %1204 = vmatprep.mubr.f32.mxu0 0.0
      %1205 = vmatmul.mubr.f32.gmra.mxu0 %v1096
      %v1206 = vpop.f32.mrf.mxu0
      %v1207 = vadd.f32 0.0, %v1206
      %v1208 = vpop.f32.mrf.mxu0
      %v1209 = vadd.f32 0.0, %v1208
      %1210 = vmatprep.mubr.f32.mxu0 0.0
      %1211 = vmatmul.mubr.f32.gmra.mxu0 %v1099
      %v1212 = vpop.f32.mrf.mxu0
      %v1213 = vadd.f32 0.0, %v1212
      %v1214 = vpop.f32.mrf.mxu0
      %v1215 = vadd.f32 0.0, %v1214
      %1216 = vmatprep.mubr.f32.mxu0 0.0
      %1217 = vmatmul.mubr.f32.gmra.mxu0 %v1102
      %v1218 = vpop.f32.mrf.mxu0
      %v1219 = vadd.f32 0.0, %v1218
      %v1220 = vpop.f32.mrf.mxu0
      %v1221 = vadd.f32 0.0, %v1220
      %1222 = vmatprep.mubr.f32.mxu0 0.0
      %1223 = vmatmul.mubr.f32.gmra.mxu0 %v1105
      %v1224 = vpop.f32.mrf.mxu0
      %v1225 = vadd.f32 0.0, %v1224
      %v1226 = vpop.f32.mrf.mxu0
      %v1227 = vadd.f32 0.0, %v1226
      %1228 = vmatprep.mubr.f32.mxu0 0.0
      %1229 = vmatmul.mubr.f32.gmra.mxu0 %v1108
      %v1230 = vpop.f32.mrf.mxu0
      %v1231 = vadd.f32 0.0, %v1230
      %v1232 = vpop.f32.mrf.mxu0
      %v1233 = vadd.f32 0.0, %v1232
      %1234 = vmatprep.mubr.f32.mxu0 0.0
      %1235 = vmatmul.mubr.f32.gmra.mxu0 %v1111
      %v1236 = vpop.f32.mrf.mxu0
      %v1237 = vadd.f32 0.0, %v1236
      %v1238 = vpop.f32.mrf.mxu0
      %v1239 = vadd.f32 0.0, %v1238
      %1240 = vmatprep.mubr.f32.mxu0 0.0
      %1241 = vmatmul.mubr.f32.gmra.mxu0 %v1114
      %v1242 = vpop.f32.mrf.mxu0
      %v1243 = vadd.f32 0.0, %v1242
      %v1244 = vpop.f32.mrf.mxu0
      %v1245 = vadd.f32 0.0, %v1244
      %1246 = vmatprep.mubr.f32.mxu0 0.0
      %1247 = vmatmul.mubr.f32.gmra.mxu0 %v1117
      %v1248 = vpop.f32.mrf.mxu0
      %v1249 = vadd.f32 0.0, %v1248
      %v1250 = vpop.f32.mrf.mxu0
      %v1251 = vadd.f32 0.0, %v1250
      %1252 = vmatprep.mubr.f32.mxu0 0.0
      %1253 = vmatmul.mubr.f32.gmra.mxu0 %v1120
      %v1254 = vpop.f32.mrf.mxu0
      %v1255 = vadd.f32 0.0, %v1254
      %v1256 = vpop.f32.mrf.mxu0
      %v1257 = vadd.f32 0.0, %v1256
      %1258 = vmatprep.mubr.f32.mxu0 0.0
      %1259 = vmatmul.mubr.f32.gmra.mxu0 %v1123
      %v1260 = vpop.f32.mrf.mxu0
      %v1261 = vadd.f32 0.0, %v1260
      %v1262 = vpop.f32.mrf.mxu0
      %v1263 = vadd.f32 0.0, %v1262
      %1264 = vmatprep.mubr.f32.mxu0 0.0
      %1265 = vmatmul.mubr.f32.gmra.mxu0 %v1126
      %v1266 = vpop.f32.mrf.mxu0
      %v1267 = vadd.f32 0.0, %v1266
      %v1268 = vpop.f32.mrf.mxu0
      %v1269 = vadd.f32 0.0, %v1268
      %1270 = vdwg.mxu0
      %v1271 = vadd.f32 %v1034, %v1195
      %v1272 = vadd.f32 %v1035, %v1197
      %v1273 = vadd.f32 %v1036, %v1201
      %v1274 = vadd.f32 %v1037, %v1203
      %v1275 = vadd.f32 %v1038, %v1207
      %v1276 = vadd.f32 %v1039, %v1209
      %v1277 = vadd.f32 %v1040, %v1213
      %v1278 = vadd.f32 %v1041, %v1215
      %v1279 = vadd.f32 %v1042, %v1219
      %v1280 = vadd.f32 %v1043, %v1221
      %v1281 = vadd.f32 %v1044, %v1225
      %v1282 = vadd.f32 %v1045, %v1227
      %v1283 = vadd.f32 %v1046, %v1231
      %v1284 = vadd.f32 %v1047, %v1233
      %v1285 = vadd.f32 %v1048, %v1237
      %v1286 = vadd.f32 %v1049, %v1239
      %v1287 = vadd.f32 %v1050, %v1243
      %v1288 = vadd.f32 %v1051, %v1245
      %v1289 = vadd.f32 %v1052, %v1249
      %v1290 = vadd.f32 %v1053, %v1251
      %v1291 = vadd.f32 %v1054, %v1255
      %v1292 = vadd.f32 %v1055, %v1257
      %v1293 = vadd.f32 %v1056, %v1261
      %v1294 = vadd.f32 %v1057, %v1263
      %v1295 = vadd.f32 %v1058, %v1267
      %v1296 = vadd.f32 %v1059, %v1269
      %s1297 = scalar_lea.vmem %s1, 520
      %v1298 = vld [vmem:[%s1297] sm:$0xff]
      %v1299 = vld [vmem:[%s1297 + $0x8] sm:$0xff]
      %v1300 = vld [vmem:[%s1297 + $0x10] sm:$0xff]
      %v1301 = vld [vmem:[%s1297 + $0x18] sm:$0xff]
      %v1302 = vld [vmem:[%s1297 + $0x20] sm:$0xff]
      %v1303 = vld [vmem:[%s1297 + $0x28] sm:$0xff]
      %v1304 = vld [vmem:[%s1297 + $0x30] sm:$0xff]
      %v1305 = vld [vmem:[%s1297 + $0x38] sm:$0xff]
      %v1306 = vld [vmem:[%s1297 + $0x40] sm:$0xff]
      %v1307 = vld [vmem:[%s1297 + $0x48] sm:$0xff]
      %v1308 = vld [vmem:[%s1297 + $0x50] sm:$0xff]
      %v1309 = vld [vmem:[%s1297 + $0x58] sm:$0xff]
      %v1310 = vld [vmem:[%s1297 + $0x60] sm:$0xf]
      %1311 = vrot.lane.b32.xlu0 %v171, 110
      %v1312 = vpop.permute.xlu0 %1311
      %1313 = vrot.lane.b32.xlu0 %v172, 110
      %v1314 = vpop.permute.xlu0 %1313
      %1315 = vrot.lane.b32.xlu0 %v173, 110
      %v1316 = vpop.permute.xlu0 %1315
      %1317 = vrot.lane.b32.xlu0 %v174, 110
      %v1318 = vpop.permute.xlu0 %1317
      %vm1319 = vcmask 900096
      %v1320 = vsel %vm1319, %v1312, %v1314
      %v1321 = vsel %vm1319, %v1316, %v1318
      %v1327 = vsel %vm221, %v1298, 0
      %v1330 = vsel %vm221, %v1299, 0
      %v1333 = vsel %vm221, %v1300, 0
      %v1336 = vsel %vm221, %v1301, 0
      %v1339 = vsel %vm221, %v1302, 0
      %v1342 = vsel %vm221, %v1303, 0
      %v1345 = vsel %vm221, %v1304, 0
      %v1348 = vsel %vm221, %v1305, 0
      %v1351 = vsel %vm221, %v1306, 0
      %v1354 = vsel %vm221, %v1307, 0
      %v1357 = vsel %vm221, %v1308, 0
      %v1360 = vsel %vm221, %v1309, 0
      %v1363 = vsel %vm221, %v1310, 0
      %1365 = vmatprep.subr.mxu0 0.0
      %1366 = vmatpush1.msra.mxu0 0.0
      %1367 = vmatprep.subr.mxu0 0.0
      %1368 = vmatpush1.msra.mxu0 0.0
      %1369 = vmatprep.subr.mxu0 0.0
      %1370 = vmatpush1.msra.mxu0 0.0
      %1371 = vmatprep.subr.mxu0 0.0
      %1372 = vmatpush1.msra.mxu0 0.0
      %1373 = vmatprep.subr.mxu0 0.0
      %1374 = vmatpush1.msra.mxu0 0.0
      %1375 = vmatprep.subr.mxu0 0.0
      %1376 = vmatpush1.msra.mxu0 0.0
      %1377 = vmatprep.subr.mxu0 0.0
      %1378 = vmatpush1.msra.mxu0 0.0
      %1379 = vmatprep.subr.mxu0 0.0
      %1380 = vmatpush1.msra.mxu0 0.0
      %1381 = vmatprep.subr.mxu0 0.0
      %1382 = vmatpush1.msra.mxu0 0.0
      %1383 = vmatprep.subr.mxu0 0.0
      %1384 = vmatpush1.msra.mxu0 0.0
      %1385 = vmatprep.subr.mxu0 0.0
      %1386 = vmatpush1.msra.mxu0 0.0
      %1387 = vmatprep.subr.mxu0 0.0
      %1388 = vmatpush1.msra.mxu0 0.0
      %1389 = vmatprep.subr.mxu0 0.0
      %1390 = vmatpush1.msra.mxu0 0.0
      %1391 = vmatprep.subr.mxu0 0.0
      %1392 = vmatpush1.msra.mxu0 0.0
      %1393 = vmatprep.subr.mxu0 %v1318
      %1394 = vmatpush1.msra.mxu0 %v1321
      %1395 = vmatprep.subr.mxu0 %v1314
      %1396 = vmatpush1.msra.mxu0 %v1320
      %1397 = vmatprep.subr.mxu0 0.0
      %1398 = vmatpush2.msra.mxu0 0.0
      %1399 = vmatprep.subr.mxu0 0.0
      %1400 = vmatpush2.msra.mxu0 0.0
      %1401 = vmatprep.subr.mxu0 0.0
      %1402 = vmatpush2.msra.mxu0 0.0
      %1403 = vmatprep.subr.mxu0 0.0
      %1404 = vmatpush2.msra.mxu0 0.0
      %1405 = vmatprep.subr.mxu0 0.0
      %1406 = vmatpush2.msra.mxu0 0.0
      %1407 = vmatprep.subr.mxu0 0.0
      %1408 = vmatpush2.msra.mxu0 0.0
      %1409 = vmatprep.subr.mxu0 0.0
      %1410 = vmatpush2.msra.mxu0 0.0
      %1411 = vmatprep.subr.mxu0 0.0
      %1412 = vmatpush2.msra.mxu0 0.0
      %1413 = vmatprep.subr.mxu0 0.0
      %1414 = vmatpush2.msra.mxu0 0.0
      %1415 = vmatprep.subr.mxu0 0.0
      %1416 = vmatpush2.msra.mxu0 0.0
      %1417 = vmatprep.subr.mxu0 0.0
      %1418 = vmatpush2.msra.mxu0 0.0
      %1419 = vmatprep.subr.mxu0 0.0
      %1420 = vmatpush2.msra.mxu0 0.0
      %1421 = vmatprep.subr.mxu0 0.0
      %1422 = vmatpush2.msra.mxu0 0.0
      %1423 = vmatprep.subr.mxu0 0.0
      %1424 = vmatpush2.msra.mxu0 0.0
      %1425 = vmatprep.subr.mxu0 0.0
      %1426 = vmatpush2.msra.mxu0 0.0
      %1427 = vmatprep.subr.mxu0 0.0
      %1428 = vmatpush2.msra.mxu0 0.0
      %1429 = vmatprep.mubr.f32.mxu0 0.0
      %1430 = vmatmul.mubr.f32.gmra.mxu0 %v1327
      %v1431 = vpop.f32.mrf.mxu0
      %v1432 = vadd.f32 0.0, %v1431
      %v1433 = vpop.f32.mrf.mxu0
      %v1434 = vadd.f32 0.0, %v1433
      %1435 = vmatprep.mubr.f32.mxu0 0.0
      %1436 = vmatmul.mubr.f32.gmra.mxu0 %v1330
      %v1437 = vpop.f32.mrf.mxu0
      %v1438 = vadd.f32 0.0, %v1437
      %v1439 = vpop.f32.mrf.mxu0
      %v1440 = vadd.f32 0.0, %v1439
      %1441 = vmatprep.mubr.f32.mxu0 0.0
      %1442 = vmatmul.mubr.f32.gmra.mxu0 %v1333
      %v1443 = vpop.f32.mrf.mxu0
      %v1444 = vadd.f32 0.0, %v1443
      %v1445 = vpop.f32.mrf.mxu0
      %v1446 = vadd.f32 0.0, %v1445
      %1447 = vmatprep.mubr.f32.mxu0 0.0
      %1448 = vmatmul.mubr.f32.gmra.mxu0 %v1336
      %v1449 = vpop.f32.mrf.mxu0
      %v1450 = vadd.f32 0.0, %v1449
      %v1451 = vpop.f32.mrf.mxu0
      %v1452 = vadd.f32 0.0, %v1451
      %1453 = vmatprep.mubr.f32.mxu0 0.0
      %1454 = vmatmul.mubr.f32.gmra.mxu0 %v1339
      %v1455 = vpop.f32.mrf.mxu0
      %v1456 = vadd.f32 0.0, %v1455
      %v1457 = vpop.f32.mrf.mxu0
      %v1458 = vadd.f32 0.0, %v1457
      %1459 = vmatprep.mubr.f32.mxu0 0.0
      %1460 = vmatmul.mubr.f32.gmra.mxu0 %v1342
      %v1461 = vpop.f32.mrf.mxu0
      %v1462 = vadd.f32 0.0, %v1461
      %v1463 = vpop.f32.mrf.mxu0
      %v1464 = vadd.f32 0.0, %v1463
      %1465 = vmatprep.mubr.f32.mxu0 0.0
      %1466 = vmatmul.mubr.f32.gmra.mxu0 %v1345
      %v1467 = vpop.f32.mrf.mxu0
      %v1468 = vadd.f32 0.0, %v1467
      %v1469 = vpop.f32.mrf.mxu0
      %v1470 = vadd.f32 0.0, %v1469
      %1471 = vmatprep.mubr.f32.mxu0 0.0
      %1472 = vmatmul.mubr.f32.gmra.mxu0 %v1348
      %v1473 = vpop.f32.mrf.mxu0
      %v1474 = vadd.f32 0.0, %v1473
      %v1475 = vpop.f32.mrf.mxu0
      %v1476 = vadd.f32 0.0, %v1475
      %1477 = vmatprep.mubr.f32.mxu0 0.0
      %1478 = vmatmul.mubr.f32.gmra.mxu0 %v1351
      %v1479 = vpop.f32.mrf.mxu0
      %v1480 = vadd.f32 0.0, %v1479
      %v1481 = vpop.f32.mrf.mxu0
      %v1482 = vadd.f32 0.0, %v1481
      %1483 = vmatprep.mubr.f32.mxu0 0.0
      %1484 = vmatmul.mubr.f32.gmra.mxu0 %v1354
      %v1485 = vpop.f32.mrf.mxu0
      %v1486 = vadd.f32 0.0, %v1485
      %v1487 = vpop.f32.mrf.mxu0
      %v1488 = vadd.f32 0.0, %v1487
      %1489 = vmatprep.mubr.f32.mxu0 0.0
      %1490 = vmatmul.mubr.f32.gmra.mxu0 %v1357
      %v1491 = vpop.f32.mrf.mxu0
      %v1492 = vadd.f32 0.0, %v1491
      %v1493 = vpop.f32.mrf.mxu0
      %v1494 = vadd.f32 0.0, %v1493
      %1495 = vmatprep.mubr.f32.mxu0 0.0
      %1496 = vmatmul.mubr.f32.gmra.mxu0 %v1360
      %v1497 = vpop.f32.mrf.mxu0
      %v1498 = vadd.f32 0.0, %v1497
      %v1499 = vpop.f32.mrf.mxu0
      %v1500 = vadd.f32 0.0, %v1499
      %1501 = vmatprep.mubr.f32.mxu0 0.0
      %1502 = vmatmul.mubr.f32.gmra.mxu0 %v1363
      %v1503 = vpop.f32.mrf.mxu0
      %v1504 = vadd.f32 0.0, %v1503
      %v1505 = vpop.f32.mrf.mxu0
      %v1506 = vadd.f32 0.0, %v1505
      %1507 = vdwg.mxu0
      %v1508 = vadd.f32 %v1271, %v1432
      %v1509 = vadd.f32 %v1272, %v1434
      %v1510 = vadd.f32 %v1273, %v1438
      %v1511 = vadd.f32 %v1274, %v1440
      %v1512 = vadd.f32 %v1275, %v1444
      %v1513 = vadd.f32 %v1276, %v1446
      %v1514 = vadd.f32 %v1277, %v1450
      %v1515 = vadd.f32 %v1278, %v1452
      %v1516 = vadd.f32 %v1279, %v1456
      %v1517 = vadd.f32 %v1280, %v1458
      %v1518 = vadd.f32 %v1281, %v1462
      %v1519 = vadd.f32 %v1282, %v1464
      %v1520 = vadd.f32 %v1283, %v1468
      %v1521 = vadd.f32 %v1284, %v1470
      %v1522 = vadd.f32 %v1285, %v1474
      %v1523 = vadd.f32 %v1286, %v1476
      %v1524 = vadd.f32 %v1287, %v1480
      %v1525 = vadd.f32 %v1288, %v1482
      %v1526 = vadd.f32 %v1289, %v1486
      %v1527 = vadd.f32 %v1290, %v1488
      %v1528 = vadd.f32 %v1291, %v1492
      %v1529 = vadd.f32 %v1292, %v1494
      %v1530 = vadd.f32 %v1293, %v1498
      %v1531 = vadd.f32 %v1294, %v1500
      %v1532 = vadd.f32 %v1295, %v1504
      %v1533 = vadd.f32 %v1296, %v1506
      %s1534 = scalar_lea.vmem %s1, 624
      %v1535 = vld [vmem:[%s1534] sm:$0xff]
      %v1536 = vld [vmem:[%s1534 + $0x8] sm:$0xff]
      %v1537 = vld [vmem:[%s1534 + $0x10] sm:$0xff]
      %v1538 = vld [vmem:[%s1534 + $0x18] sm:$0xff]
      %v1539 = vld [vmem:[%s1534 + $0x20] sm:$0xff]
      %v1540 = vld [vmem:[%s1534 + $0x28] sm:$0xff]
      %v1541 = vld [vmem:[%s1534 + $0x30] sm:$0xff]
      %v1542 = vld [vmem:[%s1534 + $0x38] sm:$0xff]
      %v1543 = vld [vmem:[%s1534 + $0x40] sm:$0xff]
      %v1544 = vld [vmem:[%s1534 + $0x48] sm:$0xff]
      %v1545 = vld [vmem:[%s1534 + $0x50] sm:$0xff]
      %v1546 = vld [vmem:[%s1534 + $0x58] sm:$0xff]
      %v1547 = vld [vmem:[%s1534 + $0x60] sm:$0xf]
      %1548 = vrot.lane.b32.xlu0 %v171, 96
      %v1549 = vpop.permute.xlu0 %1548
      %1550 = vrot.lane.b32.xlu0 %v172, 96
      %v1551 = vpop.permute.xlu0 %1550
      %1552 = vrot.lane.b32.xlu0 %v173, 96
      %v1553 = vpop.permute.xlu0 %1552
      %1554 = vrot.lane.b32.xlu0 %v174, 96
      %v1555 = vpop.permute.xlu0 %1554
      %vm1556 = vcmask 785408
      %v1557 = vsel %vm1556, %v1549, %v1551
      %v1558 = vsel %vm1556, %v1553, %v1555
      %v1564 = vsel %vm221, %v1535, 0
      %v1567 = vsel %vm221, %v1536, 0
      %v1570 = vsel %vm221, %v1537, 0
      %v1573 = vsel %vm221, %v1538, 0
      %v1576 = vsel %vm221, %v1539, 0
      %v1579 = vsel %vm221, %v1540, 0
      %v1582 = vsel %vm221, %v1541, 0
      %v1585 = vsel %vm221, %v1542, 0
      %v1588 = vsel %vm221, %v1543, 0
      %v1591 = vsel %vm221, %v1544, 0
      %v1594 = vsel %vm221, %v1545, 0
      %v1597 = vsel %vm221, %v1546, 0
      %v1600 = vsel %vm221, %v1547, 0
      %1602 = vmatprep.subr.mxu0 0.0
      %1603 = vmatpush1.msra.mxu0 0.0
      %1604 = vmatprep.subr.mxu0 0.0
      %1605 = vmatpush1.msra.mxu0 0.0
      %1606 = vmatprep.subr.mxu0 0.0
      %1607 = vmatpush1.msra.mxu0 0.0
      %1608 = vmatprep.subr.mxu0 0.0
      %1609 = vmatpush1.msra.mxu0 0.0
      %1610 = vmatprep.subr.mxu0 0.0
      %1611 = vmatpush1.msra.mxu0 0.0
      %1612 = vmatprep.subr.mxu0 0.0
      %1613 = vmatpush1.msra.mxu0 0.0
      %1614 = vmatprep.subr.mxu0 0.0
      %1615 = vmatpush1.msra.mxu0 0.0
      %1616 = vmatprep.subr.mxu0 0.0
      %1617 = vmatpush1.msra.mxu0 0.0
      %1618 = vmatprep.subr.mxu0 0.0
      %1619 = vmatpush1.msra.mxu0 0.0
      %1620 = vmatprep.subr.mxu0 0.0
      %1621 = vmatpush1.msra.mxu0 0.0
      %1622 = vmatprep.subr.mxu0 0.0
      %1623 = vmatpush1.msra.mxu0 0.0
      %1624 = vmatprep.subr.mxu0 0.0
      %1625 = vmatpush1.msra.mxu0 0.0
      %1626 = vmatprep.subr.mxu0 0.0
      %1627 = vmatpush1.msra.mxu0 0.0
      %1628 = vmatprep.subr.mxu0 0.0
      %1629 = vmatpush1.msra.mxu0 0.0
      %1630 = vmatprep.subr.mxu0 %v1555
      %1631 = vmatpush1.msra.mxu0 %v1558
      %1632 = vmatprep.subr.mxu0 %v1551
      %1633 = vmatpush1.msra.mxu0 %v1557
      %1634 = vmatprep.subr.mxu0 0.0
      %1635 = vmatpush2.msra.mxu0 0.0
      %1636 = vmatprep.subr.mxu0 0.0
      %1637 = vmatpush2.msra.mxu0 0.0
      %1638 = vmatprep.subr.mxu0 0.0
      %1639 = vmatpush2.msra.mxu0 0.0
      %1640 = vmatprep.subr.mxu0 0.0
      %1641 = vmatpush2.msra.mxu0 0.0
      %1642 = vmatprep.subr.mxu0 0.0
      %1643 = vmatpush2.msra.mxu0 0.0
      %1644 = vmatprep.subr.mxu0 0.0
      %1645 = vmatpush2.msra.mxu0 0.0
      %1646 = vmatprep.subr.mxu0 0.0
      %1647 = vmatpush2.msra.mxu0 0.0
      %1648 = vmatprep.subr.mxu0 0.0
      %1649 = vmatpush2.msra.mxu0 0.0
      %1650 = vmatprep.subr.mxu0 0.0
      %1651 = vmatpush2.msra.mxu0 0.0
      %1652 = vmatprep.subr.mxu0 0.0
      %1653 = vmatpush2.msra.mxu0 0.0
      %1654 = vmatprep.subr.mxu0 0.0
      %1655 = vmatpush2.msra.mxu0 0.0
      %1656 = vmatprep.subr.mxu0 0.0
      %1657 = vmatpush2.msra.mxu0 0.0
      %1658 = vmatprep.subr.mxu0 0.0
      %1659 = vmatpush2.msra.mxu0 0.0
      %1660 = vmatprep.subr.mxu0 0.0
      %1661 = vmatpush2.msra.mxu0 0.0
      %1662 = vmatprep.subr.mxu0 0.0
      %1663 = vmatpush2.msra.mxu0 0.0
      %1664 = vmatprep.subr.mxu0 0.0
      %1665 = vmatpush2.msra.mxu0 0.0
      %1666 = vmatprep.mubr.f32.mxu0 0.0
      %1667 = vmatmul.mubr.f32.gmra.mxu0 %v1564
      %v1668 = vpop.f32.mrf.mxu0
      %v1669 = vadd.f32 0.0, %v1668
      %v1670 = vpop.f32.mrf.mxu0
      %v1671 = vadd.f32 0.0, %v1670
      %1672 = vmatprep.mubr.f32.mxu0 0.0
      %1673 = vmatmul.mubr.f32.gmra.mxu0 %v1567
      %v1674 = vpop.f32.mrf.mxu0
      %v1675 = vadd.f32 0.0, %v1674
      %v1676 = vpop.f32.mrf.mxu0
      %v1677 = vadd.f32 0.0, %v1676
      %1678 = vmatprep.mubr.f32.mxu0 0.0
      %1679 = vmatmul.mubr.f32.gmra.mxu0 %v1570
      %v1680 = vpop.f32.mrf.mxu0
      %v1681 = vadd.f32 0.0, %v1680
      %v1682 = vpop.f32.mrf.mxu0
      %v1683 = vadd.f32 0.0, %v1682
      %1684 = vmatprep.mubr.f32.mxu0 0.0
      %1685 = vmatmul.mubr.f32.gmra.mxu0 %v1573
      %v1686 = vpop.f32.mrf.mxu0
      %v1687 = vadd.f32 0.0, %v1686
      %v1688 = vpop.f32.mrf.mxu0
      %v1689 = vadd.f32 0.0, %v1688
      %1690 = vmatprep.mubr.f32.mxu0 0.0
      %1691 = vmatmul.mubr.f32.gmra.mxu0 %v1576
      %v1692 = vpop.f32.mrf.mxu0
      %v1693 = vadd.f32 0.0, %v1692
      %v1694 = vpop.f32.mrf.mxu0
      %v1695 = vadd.f32 0.0, %v1694
      %1696 = vmatprep.mubr.f32.mxu0 0.0
      %1697 = vmatmul.mubr.f32.gmra.mxu0 %v1579
      %v1698 = vpop.f32.mrf.mxu0
      %v1699 = vadd.f32 0.0, %v1698
      %v1700 = vpop.f32.mrf.mxu0
      %v1701 = vadd.f32 0.0, %v1700
      %1702 = vmatprep.mubr.f32.mxu0 0.0
      %1703 = vmatmul.mubr.f32.gmra.mxu0 %v1582
      %v1704 = vpop.f32.mrf.mxu0
      %v1705 = vadd.f32 0.0, %v1704
      %v1706 = vpop.f32.mrf.mxu0
      %v1707 = vadd.f32 0.0, %v1706
      %1708 = vmatprep.mubr.f32.mxu0 0.0
      %1709 = vmatmul.mubr.f32.gmra.mxu0 %v1585
      %v1710 = vpop.f32.mrf.mxu0
      %v1711 = vadd.f32 0.0, %v1710
      %v1712 = vpop.f32.mrf.mxu0
      %v1713 = vadd.f32 0.0, %v1712
      %1714 = vmatprep.mubr.f32.mxu0 0.0
      %1715 = vmatmul.mubr.f32.gmra.mxu0 %v1588
      %v1716 = vpop.f32.mrf.mxu0
      %v1717 = vadd.f32 0.0, %v1716
      %v1718 = vpop.f32.mrf.mxu0
      %v1719 = vadd.f32 0.0, %v1718
      %1720 = vmatprep.mubr.f32.mxu0 0.0
      %1721 = vmatmul.mubr.f32.gmra.mxu0 %v1591
      %v1722 = vpop.f32.mrf.mxu0
      %v1723 = vadd.f32 0.0, %v1722
      %v1724 = vpop.f32.mrf.mxu0
      %v1725 = vadd.f32 0.0, %v1724
      %1726 = vmatprep.mubr.f32.mxu0 0.0
      %1727 = vmatmul.mubr.f32.gmra.mxu0 %v1594
      %v1728 = vpop.f32.mrf.mxu0
      %v1729 = vadd.f32 0.0, %v1728
      %v1730 = vpop.f32.mrf.mxu0
      %v1731 = vadd.f32 0.0, %v1730
      %1732 = vmatprep.mubr.f32.mxu0 0.0
      %1733 = vmatmul.mubr.f32.gmra.mxu0 %v1597
      %v1734 = vpop.f32.mrf.mxu0
      %v1735 = vadd.f32 0.0, %v1734
      %v1736 = vpop.f32.mrf.mxu0
      %v1737 = vadd.f32 0.0, %v1736
      %1738 = vmatprep.mubr.f32.mxu0 0.0
      %1739 = vmatmul.mubr.f32.gmra.mxu0 %v1600
      %v1740 = vpop.f32.mrf.mxu0
      %v1741 = vadd.f32 0.0, %v1740
      %v1742 = vpop.f32.mrf.mxu0
      %v1743 = vadd.f32 0.0, %v1742
      %1744 = vdwg.mxu0
      %v1745 = vadd.f32 %v1508, %v1669
      %v1746 = vadd.f32 %v1509, %v1671
      %v1747 = vadd.f32 %v1510, %v1675
      %v1748 = vadd.f32 %v1511, %v1677
      %v1749 = vadd.f32 %v1512, %v1681
      %v1750 = vadd.f32 %v1513, %v1683
      %v1751 = vadd.f32 %v1514, %v1687
      %v1752 = vadd.f32 %v1515, %v1689
      %v1753 = vadd.f32 %v1516, %v1693
      %v1754 = vadd.f32 %v1517, %v1695
      %v1755 = vadd.f32 %v1518, %v1699
      %v1756 = vadd.f32 %v1519, %v1701
      %v1757 = vadd.f32 %v1520, %v1705
      %v1758 = vadd.f32 %v1521, %v1707
      %v1759 = vadd.f32 %v1522, %v1711
      %v1760 = vadd.f32 %v1523, %v1713
      %v1761 = vadd.f32 %v1524, %v1717
      %v1762 = vadd.f32 %v1525, %v1719
      %v1763 = vadd.f32 %v1526, %v1723
      %v1764 = vadd.f32 %v1527, %v1725
      %v1765 = vadd.f32 %v1528, %v1729
      %v1766 = vadd.f32 %v1529, %v1731
      %v1767 = vadd.f32 %v1530, %v1735
      %v1768 = vadd.f32 %v1531, %v1737
      %v1769 = vadd.f32 %v1532, %v1741
      %v1770 = vadd.f32 %v1533, %v1743
      %v1771 = vld [vmem:[%s165] sm:$0xff]
      %v1772 = vld [vmem:[%s165 + $0x8] sm:$0xff]
      %v1773 = vld [vmem:[%s165 + $0x10] sm:$0xff]
      %v1774 = vld [vmem:[%s165 + $0x18] sm:$0xff]
      %v1775 = vld [vmem:[%s165 + $0x20] sm:$0xff]
      %v1776 = vld [vmem:[%s165 + $0x28] sm:$0xff]
      %s1777 = scalar_lea.vmem %s1, 728
      %v1778 = vld [vmem:[%s1777] sm:$0xff]
      %v1779 = vld [vmem:[%s1777 + $0x8] sm:$0xff]
      %v1780 = vld [vmem:[%s1777 + $0x10] sm:$0xff]
      %v1781 = vld [vmem:[%s1777 + $0x18] sm:$0xff]
      %v1782 = vld [vmem:[%s1777 + $0x20] sm:$0xff]
      %v1783 = vld [vmem:[%s1777 + $0x28] sm:$0xff]
      %v1784 = vld [vmem:[%s1777 + $0x30] sm:$0xff]
      %v1785 = vld [vmem:[%s1777 + $0x38] sm:$0xff]
      %v1786 = vld [vmem:[%s1777 + $0x40] sm:$0xff]
      %v1787 = vld [vmem:[%s1777 + $0x48] sm:$0xff]
      %v1788 = vld [vmem:[%s1777 + $0x50] sm:$0xff]
      %v1789 = vld [vmem:[%s1777 + $0x58] sm:$0xff]
      %v1790 = vld [vmem:[%s1777 + $0x60] sm:$0xf]
      %1797 = vrot.lane.b32.xlu0 %v1771, 95
      %v1798 = vpop.permute.xlu0 %1797
      %1799 = vrot.lane.b32.xlu0 %v1772, 95
      %v1800 = vpop.permute.xlu0 %1799
      %1801 = vrot.lane.b32.xlu0 %v1773, 95
      %v1802 = vpop.permute.xlu0 %1801
      %1803 = vrot.lane.b32.xlu0 %v1774, 95
      %v1804 = vpop.permute.xlu0 %1803
      %1805 = vrot.lane.b32.xlu0 %v1775, 95
      %v1806 = vpop.permute.xlu0 %1805
      %1807 = vrot.lane.b32.xlu0 %v1776, 95
      %v1808 = vpop.permute.xlu0 %1807
      %vm1809 = vcmask 777216
      %v1810 = vsel %vm1809, %v1798, %v1800
      %v1811 = vsel %vm1809, %v1800, %v1802
      %v1812 = vsel %vm1809, %v1804, %v1806
      %v1813 = vsel %vm1809, %v1806, %v1808
      %v1819 = vsel %vm221, %v1778, 0
      %v1822 = vsel %vm221, %v1779, 0
      %v1825 = vsel %vm221, %v1780, 0
      %v1828 = vsel %vm221, %v1781, 0
      %v1831 = vsel %vm221, %v1782, 0
      %v1834 = vsel %vm221, %v1783, 0
      %v1837 = vsel %vm221, %v1784, 0
      %v1840 = vsel %vm221, %v1785, 0
      %v1843 = vsel %vm221, %v1786, 0
      %v1846 = vsel %vm221, %v1787, 0
      %v1849 = vsel %vm221, %v1788, 0
      %v1852 = vsel %vm221, %v1789, 0
      %v1855 = vsel %vm221, %v1790, 0
      %1857 = vmatprep.subr.mxu0 0.0
      %1858 = vmatpush1.msra.mxu0 0.0
      %1859 = vmatprep.subr.mxu0 0.0
      %1860 = vmatpush1.msra.mxu0 0.0
      %1861 = vmatprep.subr.mxu0 0.0
      %1862 = vmatpush1.msra.mxu0 0.0
      %1863 = vmatprep.subr.mxu0 0.0
      %1864 = vmatpush1.msra.mxu0 0.0
      %1865 = vmatprep.subr.mxu0 0.0
      %1866 = vmatpush1.msra.mxu0 0.0
      %1867 = vmatprep.subr.mxu0 0.0
      %1868 = vmatpush1.msra.mxu0 0.0
      %1869 = vmatprep.subr.mxu0 0.0
      %1870 = vmatpush1.msra.mxu0 0.0
      %1871 = vmatprep.subr.mxu0 0.0
      %1872 = vmatpush1.msra.mxu0 0.0
      %1873 = vmatprep.subr.mxu0 0.0
      %1874 = vmatpush1.msra.mxu0 0.0
      %1875 = vmatprep.subr.mxu0 0.0
      %1876 = vmatpush1.msra.mxu0 0.0
      %1877 = vmatprep.subr.mxu0 0.0
      %1878 = vmatpush1.msra.mxu0 0.0
      %1879 = vmatprep.subr.mxu0 0.0
      %1880 = vmatpush1.msra.mxu0 0.0
      %1881 = vmatprep.subr.mxu0 0.0
      %1882 = vmatpush1.msra.mxu0 0.0
      %1883 = vmatprep.subr.mxu0 0.0
      %1884 = vmatpush1.msra.mxu0 0.0
      %1885 = vmatprep.subr.mxu0 %v1813
      %1886 = vmatpush1.msra.mxu0 %v1812
      %1887 = vmatprep.subr.mxu0 %v1811
      %1888 = vmatpush1.msra.mxu0 %v1810
      %1889 = vmatprep.subr.mxu0 0.0
      %1890 = vmatpush2.msra.mxu0 0.0
      %1891 = vmatprep.subr.mxu0 0.0
      %1892 = vmatpush2.msra.mxu0 0.0
      %1893 = vmatprep.subr.mxu0 0.0
      %1894 = vmatpush2.msra.mxu0 0.0
      %1895 = vmatprep.subr.mxu0 0.0
      %1896 = vmatpush2.msra.mxu0 0.0
      %1897 = vmatprep.subr.mxu0 0.0
      %1898 = vmatpush2.msra.mxu0 0.0
      %1899 = vmatprep.subr.mxu0 0.0
      %1900 = vmatpush2.msra.mxu0 0.0
      %1901 = vmatprep.subr.mxu0 0.0
      %1902 = vmatpush2.msra.mxu0 0.0
      %1903 = vmatprep.subr.mxu0 0.0
      %1904 = vmatpush2.msra.mxu0 0.0
      %1905 = vmatprep.subr.mxu0 0.0
      %1906 = vmatpush2.msra.mxu0 0.0
      %1907 = vmatprep.subr.mxu0 0.0
      %1908 = vmatpush2.msra.mxu0 0.0
      %1909 = vmatprep.subr.mxu0 0.0
      %1910 = vmatpush2.msra.mxu0 0.0
      %1911 = vmatprep.subr.mxu0 0.0
      %1912 = vmatpush2.msra.mxu0 0.0
      %1913 = vmatprep.subr.mxu0 0.0
      %1914 = vmatpush2.msra.mxu0 0.0
      %1915 = vmatprep.subr.mxu0 0.0
      %1916 = vmatpush2.msra.mxu0 0.0
      %1917 = vmatprep.subr.mxu0 0.0
      %1918 = vmatpush2.msra.mxu0 0.0
      %1919 = vmatprep.subr.mxu0 0.0
      %1920 = vmatpush2.msra.mxu0 0.0
      %1921 = vmatprep.mubr.f32.mxu0 0.0
      %1922 = vmatmul.mubr.f32.gmra.mxu0 %v1819
      %v1923 = vpop.f32.mrf.mxu0
      %v1924 = vadd.f32 0.0, %v1923
      %v1925 = vpop.f32.mrf.mxu0
      %v1926 = vadd.f32 0.0, %v1925
      %1927 = vmatprep.mubr.f32.mxu0 0.0
      %1928 = vmatmul.mubr.f32.gmra.mxu0 %v1822
      %v1929 = vpop.f32.mrf.mxu0
      %v1930 = vadd.f32 0.0, %v1929
      %v1931 = vpop.f32.mrf.mxu0
      %v1932 = vadd.f32 0.0, %v1931
      %1933 = vmatprep.mubr.f32.mxu0 0.0
      %1934 = vmatmul.mubr.f32.gmra.mxu0 %v1825
      %v1935 = vpop.f32.mrf.mxu0
      %v1936 = vadd.f32 0.0, %v1935
      %v1937 = vpop.f32.mrf.mxu0
      %v1938 = vadd.f32 0.0, %v1937
      %1939 = vmatprep.mubr.f32.mxu0 0.0
      %1940 = vmatmul.mubr.f32.gmra.mxu0 %v1828
      %v1941 = vpop.f32.mrf.mxu0
      %v1942 = vadd.f32 0.0, %v1941
      %v1943 = vpop.f32.mrf.mxu0
      %v1944 = vadd.f32 0.0, %v1943
      %1945 = vmatprep.mubr.f32.mxu0 0.0
      %1946 = vmatmul.mubr.f32.gmra.mxu0 %v1831
      %v1947 = vpop.f32.mrf.mxu0
      %v1948 = vadd.f32 0.0, %v1947
      %v1949 = vpop.f32.mrf.mxu0
      %v1950 = vadd.f32 0.0, %v1949
      %1951 = vmatprep.mubr.f32.mxu0 0.0
      %1952 = vmatmul.mubr.f32.gmra.mxu0 %v1834
      %v1953 = vpop.f32.mrf.mxu0
      %v1954 = vadd.f32 0.0, %v1953
      %v1955 = vpop.f32.mrf.mxu0
      %v1956 = vadd.f32 0.0, %v1955
      %1957 = vmatprep.mubr.f32.mxu0 0.0
      %1958 = vmatmul.mubr.f32.gmra.mxu0 %v1837
      %v1959 = vpop.f32.mrf.mxu0
      %v1960 = vadd.f32 0.0, %v1959
      %v1961 = vpop.f32.mrf.mxu0
      %v1962 = vadd.f32 0.0, %v1961
      %1963 = vmatprep.mubr.f32.mxu0 0.0
      %1964 = vmatmul.mubr.f32.gmra.mxu0 %v1840
      %v1965 = vpop.f32.mrf.mxu0
      %v1966 = vadd.f32 0.0, %v1965
      %v1967 = vpop.f32.mrf.mxu0
      %v1968 = vadd.f32 0.0, %v1967
      %1969 = vmatprep.mubr.f32.mxu0 0.0
      %1970 = vmatmul.mubr.f32.gmra.mxu0 %v1843
      %v1971 = vpop.f32.mrf.mxu0
      %v1972 = vadd.f32 0.0, %v1971
      %v1973 = vpop.f32.mrf.mxu0
      %v1974 = vadd.f32 0.0, %v1973
      %1975 = vmatprep.mubr.f32.mxu0 0.0
      %1976 = vmatmul.mubr.f32.gmra.mxu0 %v1846
      %v1977 = vpop.f32.mrf.mxu0
      %v1978 = vadd.f32 0.0, %v1977
      %v1979 = vpop.f32.mrf.mxu0
      %v1980 = vadd.f32 0.0, %v1979
      %1981 = vmatprep.mubr.f32.mxu0 0.0
      %1982 = vmatmul.mubr.f32.gmra.mxu0 %v1849
      %v1983 = vpop.f32.mrf.mxu0
      %v1984 = vadd.f32 0.0, %v1983
      %v1985 = vpop.f32.mrf.mxu0
      %v1986 = vadd.f32 0.0, %v1985
      %1987 = vmatprep.mubr.f32.mxu0 0.0
      %1988 = vmatmul.mubr.f32.gmra.mxu0 %v1852
      %v1989 = vpop.f32.mrf.mxu0
      %v1990 = vadd.f32 0.0, %v1989
      %v1991 = vpop.f32.mrf.mxu0
      %v1992 = vadd.f32 0.0, %v1991
      %1993 = vmatprep.mubr.f32.mxu0 0.0
      %1994 = vmatmul.mubr.f32.gmra.mxu0 %v1855
      %v1995 = vpop.f32.mrf.mxu0
      %v1996 = vadd.f32 0.0, %v1995
      %v1997 = vpop.f32.mrf.mxu0
      %v1998 = vadd.f32 0.0, %v1997
      %1999 = vdwg.mxu0
      %v2000 = vadd.f32 %v1745, %v1924
      %v2001 = vadd.f32 %v1746, %v1926
      %v2002 = vadd.f32 %v1747, %v1930
      %v2003 = vadd.f32 %v1748, %v1932
      %v2004 = vadd.f32 %v1749, %v1936
      %v2005 = vadd.f32 %v1750, %v1938
      %v2006 = vadd.f32 %v1751, %v1942
      %v2007 = vadd.f32 %v1752, %v1944
      %v2008 = vadd.f32 %v1753, %v1948
      %v2009 = vadd.f32 %v1754, %v1950
      %v2010 = vadd.f32 %v1755, %v1954
      %v2011 = vadd.f32 %v1756, %v1956
      %v2012 = vadd.f32 %v1757, %v1960
      %v2013 = vadd.f32 %v1758, %v1962
      %v2014 = vadd.f32 %v1759, %v1966
      %v2015 = vadd.f32 %v1760, %v1968
      %v2016 = vadd.f32 %v1761, %v1972
      %v2017 = vadd.f32 %v1762, %v1974
      %v2018 = vadd.f32 %v1763, %v1978
      %v2019 = vadd.f32 %v1764, %v1980
      %v2020 = vadd.f32 %v1765, %v1984
      %v2021 = vadd.f32 %v1766, %v1986
      %v2022 = vadd.f32 %v1767, %v1990
      %v2023 = vadd.f32 %v1768, %v1992
      %v2024 = vadd.f32 %v1769, %v1996
      %v2025 = vadd.f32 %v1770, %v1998
      %s2026 = scalar_lea.vmem %s1, 832
      %v2027 = vld [vmem:[%s2026] sm:$0xff]
      %v2028 = vld [vmem:[%s2026 + $0x8] sm:$0xff]
      %v2029 = vld [vmem:[%s2026 + $0x10] sm:$0xff]
      %v2030 = vld [vmem:[%s2026 + $0x18] sm:$0xff]
      %v2031 = vld [vmem:[%s2026 + $0x20] sm:$0xff]
      %v2032 = vld [vmem:[%s2026 + $0x28] sm:$0xff]
      %v2033 = vld [vmem:[%s2026 + $0x30] sm:$0xff]
      %v2034 = vld [vmem:[%s2026 + $0x38] sm:$0xff]
      %v2035 = vld [vmem:[%s2026 + $0x40] sm:$0xff]
      %v2036 = vld [vmem:[%s2026 + $0x48] sm:$0xff]
      %v2037 = vld [vmem:[%s2026 + $0x50] sm:$0xff]
      %v2038 = vld [vmem:[%s2026 + $0x58] sm:$0xff]
      %v2039 = vld [vmem:[%s2026 + $0x60] sm:$0xf]
      %2040 = vrot.lane.b32.xlu0 %v1771, 94
      %v2041 = vpop.permute.xlu0 %2040
      %2042 = vrot.lane.b32.xlu0 %v1772, 94
      %v2043 = vpop.permute.xlu0 %2042
      %2044 = vrot.lane.b32.xlu0 %v1773, 94
      %v2045 = vpop.permute.xlu0 %2044
      %2046 = vrot.lane.b32.xlu0 %v1774, 94
      %v2047 = vpop.permute.xlu0 %2046
      %2048 = vrot.lane.b32.xlu0 %v1775, 94
      %v2049 = vpop.permute.xlu0 %2048
      %2050 = vrot.lane.b32.xlu0 %v1776, 94
      %v2051 = vpop.permute.xlu0 %2050
      %vm2052 = vcmask 769024
      %v2053 = vsel %vm2052, %v2041, %v2043
      %v2054 = vsel %vm2052, %v2043, %v2045
      %v2055 = vsel %vm2052, %v2047, %v2049
      %v2056 = vsel %vm2052, %v2049, %v2051
      %v2062 = vsel %vm221, %v2027, 0
      %v2065 = vsel %vm221, %v2028, 0
      %v2068 = vsel %vm221, %v2029, 0
      %v2071 = vsel %vm221, %v2030, 0
      %v2074 = vsel %vm221, %v2031, 0
      %v2077 = vsel %vm221, %v2032, 0
      %v2080 = vsel %vm221, %v2033, 0
      %v2083 = vsel %vm221, %v2034, 0
      %v2086 = vsel %vm221, %v2035, 0
      %v2089 = vsel %vm221, %v2036, 0
      %v2092 = vsel %vm221, %v2037, 0
      %v2095 = vsel %vm221, %v2038, 0
      %v2098 = vsel %vm221, %v2039, 0
      %2100 = vmatprep.subr.mxu0 0.0
      %2101 = vmatpush1.msra.mxu0 0.0
      %2102 = vmatprep.subr.mxu0 0.0
      %2103 = vmatpush1.msra.mxu0 0.0
      %2104 = vmatprep.subr.mxu0 0.0
      %2105 = vmatpush1.msra.mxu0 0.0
      %2106 = vmatprep.subr.mxu0 0.0
      %2107 = vmatpush1.msra.mxu0 0.0
      %2108 = vmatprep.subr.mxu0 0.0
      %2109 = vmatpush1.msra.mxu0 0.0
      %2110 = vmatprep.subr.mxu0 0.0
      %2111 = vmatpush1.msra.mxu0 0.0
      %2112 = vmatprep.subr.mxu0 0.0
      %2113 = vmatpush1.msra.mxu0 0.0
      %2114 = vmatprep.subr.mxu0 0.0
      %2115 = vmatpush1.msra.mxu0 0.0
      %2116 = vmatprep.subr.mxu0 0.0
      %2117 = vmatpush1.msra.mxu0 0.0
      %2118 = vmatprep.subr.mxu0 0.0
      %2119 = vmatpush1.msra.mxu0 0.0
      %2120 = vmatprep.subr.mxu0 0.0
      %2121 = vmatpush1.msra.mxu0 0.0
      %2122 = vmatprep.subr.mxu0 0.0
      %2123 = vmatpush1.msra.mxu0 0.0
      %2124 = vmatprep.subr.mxu0 0.0
      %2125 = vmatpush1.msra.mxu0 0.0
      %2126 = vmatprep.subr.mxu0 0.0
      %2127 = vmatpush1.msra.mxu0 0.0
      %2128 = vmatprep.subr.mxu0 %v2056
      %2129 = vmatpush1.msra.mxu0 %v2055
      %2130 = vmatprep.subr.mxu0 %v2054
      %2131 = vmatpush1.msra.mxu0 %v2053
      %2132 = vmatprep.subr.mxu0 0.0
      %2133 = vmatpush2.msra.mxu0 0.0
      %2134 = vmatprep.subr.mxu0 0.0
      %2135 = vmatpush2.msra.mxu0 0.0
      %2136 = vmatprep.subr.mxu0 0.0
      %2137 = vmatpush2.msra.mxu0 0.0
      %2138 = vmatprep.subr.mxu0 0.0
      %2139 = vmatpush2.msra.mxu0 0.0
      %2140 = vmatprep.subr.mxu0 0.0
      %2141 = vmatpush2.msra.mxu0 0.0
      %2142 = vmatprep.subr.mxu0 0.0
      %2143 = vmatpush2.msra.mxu0 0.0
      %2144 = vmatprep.subr.mxu0 0.0
      %2145 = vmatpush2.msra.mxu0 0.0
      %2146 = vmatprep.subr.mxu0 0.0
      %2147 = vmatpush2.msra.mxu0 0.0
      %2148 = vmatprep.subr.mxu0 0.0
      %2149 = vmatpush2.msra.mxu0 0.0
      %2150 = vmatprep.subr.mxu0 0.0
      %2151 = vmatpush2.msra.mxu0 0.0
      %2152 = vmatprep.subr.mxu0 0.0
      %2153 = vmatpush2.msra.mxu0 0.0
      %2154 = vmatprep.subr.mxu0 0.0
      %2155 = vmatpush2.msra.mxu0 0.0
      %2156 = vmatprep.subr.mxu0 0.0
      %2157 = vmatpush2.msra.mxu0 0.0
      %2158 = vmatprep.subr.mxu0 0.0
      %2159 = vmatpush2.msra.mxu0 0.0
      %2160 = vmatprep.subr.mxu0 0.0
      %2161 = vmatpush2.msra.mxu0 0.0
      %2162 = vmatprep.subr.mxu0 0.0
      %2163 = vmatpush2.msra.mxu0 0.0
      %2164 = vmatprep.mubr.f32.mxu0 0.0
      %2165 = vmatmul.mubr.f32.gmra.mxu0 %v2062
      %v2166 = vpop.f32.mrf.mxu0
      %v2167 = vadd.f32 0.0, %v2166
      %v2168 = vpop.f32.mrf.mxu0
      %v2169 = vadd.f32 0.0, %v2168
      %2170 = vmatprep.mubr.f32.mxu0 0.0
      %2171 = vmatmul.mubr.f32.gmra.mxu0 %v2065
      %v2172 = vpop.f32.mrf.mxu0
      %v2173 = vadd.f32 0.0, %v2172
      %v2174 = vpop.f32.mrf.mxu0
      %v2175 = vadd.f32 0.0, %v2174
      %2176 = vmatprep.mubr.f32.mxu0 0.0
      %2177 = vmatmul.mubr.f32.gmra.mxu0 %v2068
      %v2178 = vpop.f32.mrf.mxu0
      %v2179 = vadd.f32 0.0, %v2178
      %v2180 = vpop.f32.mrf.mxu0
      %v2181 = vadd.f32 0.0, %v2180
      %2182 = vmatprep.mubr.f32.mxu0 0.0
      %2183 = vmatmul.mubr.f32.gmra.mxu0 %v2071
      %v2184 = vpop.f32.mrf.mxu0
      %v2185 = vadd.f32 0.0, %v2184
      %v2186 = vpop.f32.mrf.mxu0
      %v2187 = vadd.f32 0.0, %v2186
      %2188 = vmatprep.mubr.f32.mxu0 0.0
      %2189 = vmatmul.mubr.f32.gmra.mxu0 %v2074
      %v2190 = vpop.f32.mrf.mxu0
      %v2191 = vadd.f32 0.0, %v2190
      %v2192 = vpop.f32.mrf.mxu0
      %v2193 = vadd.f32 0.0, %v2192
      %2194 = vmatprep.mubr.f32.mxu0 0.0
      %2195 = vmatmul.mubr.f32.gmra.mxu0 %v2077
      %v2196 = vpop.f32.mrf.mxu0
      %v2197 = vadd.f32 0.0, %v2196
      %v2198 = vpop.f32.mrf.mxu0
      %v2199 = vadd.f32 0.0, %v2198
      %2200 = vmatprep.mubr.f32.mxu0 0.0
      %2201 = vmatmul.mubr.f32.gmra.mxu0 %v2080
      %v2202 = vpop.f32.mrf.mxu0
      %v2203 = vadd.f32 0.0, %v2202
      %v2204 = vpop.f32.mrf.mxu0
      %v2205 = vadd.f32 0.0, %v2204
      %2206 = vmatprep.mubr.f32.mxu0 0.0
      %2207 = vmatmul.mubr.f32.gmra.mxu0 %v2083
      %v2208 = vpop.f32.mrf.mxu0
      %v2209 = vadd.f32 0.0, %v2208
      %v2210 = vpop.f32.mrf.mxu0
      %v2211 = vadd.f32 0.0, %v2210
      %2212 = vmatprep.mubr.f32.mxu0 0.0
      %2213 = vmatmul.mubr.f32.gmra.mxu0 %v2086
      %v2214 = vpop.f32.mrf.mxu0
      %v2215 = vadd.f32 0.0, %v2214
      %v2216 = vpop.f32.mrf.mxu0
      %v2217 = vadd.f32 0.0, %v2216
      %2218 = vmatprep.mubr.f32.mxu0 0.0
      %2219 = vmatmul.mubr.f32.gmra.mxu0 %v2089
      %v2220 = vpop.f32.mrf.mxu0
      %v2221 = vadd.f32 0.0, %v2220
      %v2222 = vpop.f32.mrf.mxu0
      %v2223 = vadd.f32 0.0, %v2222
      %2224 = vmatprep.mubr.f32.mxu0 0.0
      %2225 = vmatmul.mubr.f32.gmra.mxu0 %v2092
      %v2226 = vpop.f32.mrf.mxu0
      %v2227 = vadd.f32 0.0, %v2226
      %v2228 = vpop.f32.mrf.mxu0
      %v2229 = vadd.f32 0.0, %v2228
      %2230 = vmatprep.mubr.f32.mxu0 0.0
      %2231 = vmatmul.mubr.f32.gmra.mxu0 %v2095
      %v2232 = vpop.f32.mrf.mxu0
      %v2233 = vadd.f32 0.0, %v2232
      %v2234 = vpop.f32.mrf.mxu0
      %v2235 = vadd.f32 0.0, %v2234
      %2236 = vmatprep.mubr.f32.mxu0 0.0
      %2237 = vmatmul.mubr.f32.gmra.mxu0 %v2098
      %v2238 = vpop.f32.mrf.mxu0
      %v2239 = vadd.f32 0.0, %v2238
      %v2240 = vpop.f32.mrf.mxu0
      %v2241 = vadd.f32 0.0, %v2240
      %2242 = vdwg.mxu0
      %v2243 = vadd.f32 %v2000, %v2167
      %v2244 = vadd.f32 %v2001, %v2169
      %v2245 = vadd.f32 %v2002, %v2173
      %v2246 = vadd.f32 %v2003, %v2175
      %v2247 = vadd.f32 %v2004, %v2179
      %v2248 = vadd.f32 %v2005, %v2181
      %v2249 = vadd.f32 %v2006, %v2185
      %v2250 = vadd.f32 %v2007, %v2187
      %v2251 = vadd.f32 %v2008, %v2191
      %v2252 = vadd.f32 %v2009, %v2193
      %v2253 = vadd.f32 %v2010, %v2197
      %v2254 = vadd.f32 %v2011, %v2199
      %v2255 = vadd.f32 %v2012, %v2203
      %v2256 = vadd.f32 %v2013, %v2205
      %v2257 = vadd.f32 %v2014, %v2209
      %v2258 = vadd.f32 %v2015, %v2211
      %v2259 = vadd.f32 %v2016, %v2215
      %v2260 = vadd.f32 %v2017, %v2217
      %v2261 = vadd.f32 %v2018, %v2221
      %v2262 = vadd.f32 %v2019, %v2223
      %v2263 = vadd.f32 %v2020, %v2227
      %v2264 = vadd.f32 %v2021, %v2229
      %v2265 = vadd.f32 %v2022, %v2233
      %v2266 = vadd.f32 %v2023, %v2235
      %v2267 = vadd.f32 %v2024, %v2239
      %v2268 = vadd.f32 %v2025, %v2241
      %v2269 = vld [vmem:[%s2] sm:$0xff]
      %v2270 = vld [vmem:[%s2 + $0x8] sm:$0xff]
      %v2271 = vld [vmem:[%s2 + $0x10] sm:$0xff]
      %v2272 = vld [vmem:[%s2 + $0x18] sm:$0xff]
      %v2273 = vld [vmem:[%s2 + $0x20] sm:$0xff]
      %v2274 = vld [vmem:[%s2 + $0x28] sm:$0xff]
      %v2275 = vld [vmem:[%s2 + $0x30] sm:$0xff]
      %v2276 = vld [vmem:[%s2 + $0x38] sm:$0xff]
      %v2277 = vld [vmem:[%s2 + $0x40] sm:$0xff]
      %v2278 = vld [vmem:[%s2 + $0x48] sm:$0xff]
      %v2279 = vld [vmem:[%s2 + $0x50] sm:$0xff]
      %v2280 = vld [vmem:[%s2 + $0x58] sm:$0xff]
      %v2281 = vld [vmem:[%s2 + $0x60] sm:$0xf]
      %2283 = vset.pattern.permute.xlu0 0
      %2284 = vperm.xlu0 %2283, %v2269
      %v2285 = vpop.permute.xlu0 %2284
      %2288 = vset.pattern.permute.xlu0 0
      %2289 = vperm.xlu0 %2288, %v2270
      %v2290 = vpop.permute.xlu0 %2289
      %2293 = vset.pattern.permute.xlu0 0
      %2294 = vperm.xlu0 %2293, %v2271
      %v2295 = vpop.permute.xlu0 %2294
      %2298 = vset.pattern.permute.xlu0 0
      %2299 = vperm.xlu0 %2298, %v2272
      %v2300 = vpop.permute.xlu0 %2299
      %2303 = vset.pattern.permute.xlu0 0
      %2304 = vperm.xlu0 %2303, %v2273
      %v2305 = vpop.permute.xlu0 %2304
      %2308 = vset.pattern.permute.xlu0 0
      %2309 = vperm.xlu0 %2308, %v2274
      %v2310 = vpop.permute.xlu0 %2309
      %2313 = vset.pattern.permute.xlu0 0
      %2314 = vperm.xlu0 %2313, %v2275
      %v2315 = vpop.permute.xlu0 %2314
      %2318 = vset.pattern.permute.xlu0 0
      %2319 = vperm.xlu0 %2318, %v2276
      %v2320 = vpop.permute.xlu0 %2319
      %2323 = vset.pattern.permute.xlu0 0
      %2324 = vperm.xlu0 %2323, %v2277
      %v2325 = vpop.permute.xlu0 %2324
      %2328 = vset.pattern.permute.xlu0 0
      %2329 = vperm.xlu0 %2328, %v2278
      %v2330 = vpop.permute.xlu0 %2329
      %2333 = vset.pattern.permute.xlu0 0
      %2334 = vperm.xlu0 %2333, %v2279
      %v2335 = vpop.permute.xlu0 %2334
      %2338 = vset.pattern.permute.xlu0 0
      %2339 = vperm.xlu0 %2338, %v2280
      %v2340 = vpop.permute.xlu0 %2339
      %2343 = vset.pattern.permute.xlu0 0
      %2344 = vperm.xlu0 %2343, %v2281
      %v2345 = vpop.permute.xlu0 %2344
      %v2347 = vadd.f32 %v2243, %v2285
      %v2348 = vadd.f32 %v2244, %v2285
      %v2349 = vadd.f32 %v2245, %v2290
      %v2350 = vadd.f32 %v2246, %v2290
      %v2351 = vadd.f32 %v2247, %v2295
      %v2352 = vadd.f32 %v2248, %v2295
      %v2353 = vadd.f32 %v2249, %v2300
      %v2354 = vadd.f32 %v2250, %v2300
      %v2355 = vadd.f32 %v2251, %v2305
      %v2356 = vadd.f32 %v2252, %v2305
      %v2357 = vadd.f32 %v2253, %v2310
      %v2358 = vadd.f32 %v2254, %v2310
      %v2359 = vadd.f32 %v2255, %v2315
      %v2360 = vadd.f32 %v2256, %v2315
      %v2361 = vadd.f32 %v2257, %v2320
      %v2362 = vadd.f32 %v2258, %v2320
      %v2363 = vadd.f32 %v2259, %v2325
      %v2364 = vadd.f32 %v2260, %v2325
      %v2365 = vadd.f32 %v2261, %v2330
      %v2366 = vadd.f32 %v2262, %v2330
      %v2367 = vadd.f32 %v2263, %v2335
      %v2368 = vadd.f32 %v2264, %v2335
      %v2369 = vadd.f32 %v2265, %v2340
      %v2370 = vadd.f32 %v2266, %v2340
      %v2371 = vadd.f32 %v2267, %v2345
      %v2372 = vadd.f32 %v2268, %v2345
      %v2373 = vmax.f32 %v2347, 0.0
      %v2374 = vmax.f32 %v2348, 0.0
      %v2375 = vmax.f32 %v2349, 0.0
      %v2376 = vmax.f32 %v2350, 0.0
      %v2377 = vmax.f32 %v2351, 0.0
      %v2378 = vmax.f32 %v2352, 0.0
      %v2379 = vmax.f32 %v2353, 0.0
      %v2380 = vmax.f32 %v2354, 0.0
      %v2381 = vmax.f32 %v2355, 0.0
      %v2382 = vmax.f32 %v2356, 0.0
      %v2383 = vmax.f32 %v2357, 0.0
      %v2384 = vmax.f32 %v2358, 0.0
      %v2385 = vmax.f32 %v2359, 0.0
      %v2386 = vmax.f32 %v2360, 0.0
      %v2387 = vmax.f32 %v2361, 0.0
      %v2388 = vmax.f32 %v2362, 0.0
      %v2389 = vmax.f32 %v2363, 0.0
      %v2390 = vmax.f32 %v2364, 0.0
      %v2391 = vmax.f32 %v2365, 0.0
      %v2392 = vmax.f32 %v2366, 0.0
      %v2393 = vmax.f32 %v2367, 0.0
      %v2394 = vmax.f32 %v2368, 0.0
      %v2395 = vmax.f32 %v2369, 0.0
      %v2396 = vmax.f32 %v2370, 0.0
      %v2397 = vmax.f32 %v2371, 0.0
      %v2398 = vmax.f32 %v2372, 0.0
      %2399 = vst [vmem:[%s170] sm:$0xff] %v2373
      %2400 = vst.msk [vmem:[%s170 + $0x8] sm:$0xff] %vm1556, %v2374
      %2401 = vst [vmem:[%s170 + $0x10] sm:$0xff] %v2375
      %2402 = vst.msk [vmem:[%s170 + $0x18] sm:$0xff] %vm1556, %v2376
      %2403 = vst [vmem:[%s170 + $0x20] sm:$0xff] %v2377
      %2404 = vst.msk [vmem:[%s170 + $0x28] sm:$0xff] %vm1556, %v2378
      %2405 = vst [vmem:[%s170 + $0x30] sm:$0xff] %v2379
      %2406 = vst.msk [vmem:[%s170 + $0x38] sm:$0xff] %vm1556, %v2380
      %2407 = vst [vmem:[%s170 + $0x40] sm:$0xff] %v2381
      %2408 = vst.msk [vmem:[%s170 + $0x48] sm:$0xff] %vm1556, %v2382
      %2409 = vst [vmem:[%s170 + $0x50] sm:$0xff] %v2383
      %2410 = vst.msk [vmem:[%s170 + $0x58] sm:$0xff] %vm1556, %v2384
      %2411 = vst [vmem:[%s170 + $0x60] sm:$0xff] %v2385
      %2412 = vst.msk [vmem:[%s170 + $0x68] sm:$0xff] %vm1556, %v2386
      %2413 = vst [vmem:[%s170 + $0x70] sm:$0xff] %v2387
      %2414 = vst.msk [vmem:[%s170 + $0x78] sm:$0xff] %vm1556, %v2388
      %2415 = vst [vmem:[%s170 + $0x80] sm:$0xff] %v2389
      %2416 = vst.msk [vmem:[%s170 + $0x88] sm:$0xff] %vm1556, %v2390
      %2417 = vst [vmem:[%s170 + $0x90] sm:$0xff] %v2391
      %2418 = vst.msk [vmem:[%s170 + $0x98] sm:$0xff] %vm1556, %v2392
      %2419 = vst [vmem:[%s170 + $0xa0] sm:$0xff] %v2393
      %2420 = vst.msk [vmem:[%s170 + $0xa8] sm:$0xff] %vm1556, %v2394
      %2421 = vst [vmem:[%s170 + $0xb0] sm:$0xff] %v2395
      %2422 = vst.msk [vmem:[%s170 + $0xb8] sm:$0xff] %vm1556, %v2396
      %2423 = vst [vmem:[%s170 + $0xc0] sm:$0xf] %v2397
      %vm2424 = vcmask 781312
      %2425 = vst.msk [vmem:[%s170 + $0xc8] sm:$0xf] %vm2424, %v2398
      %p2426 = scmp.lt.s32.totalorder %s14, 1
      %s2427 = scalar_select %p2426, %s14, 1
      %s2428 = smul.addr %s2427, 26
      %s2429 = smul.addr %s2428, 8
      %s2430 = scalar_lea.vmem %s3, %s2429
      // Predicated region
      $region33: #{conv2d_relu.1} parent=31 // pred_check
        %p2431 = pneg %p100
      $region34: #{conv2d_relu.1} parent=31 // pred_check_branch
        %2433 = sbr.rel (%p2431) target = $region36
      $region35: #{conv2d_relu.1} parent=31 // pred_region
        _
      $region36: #{conv2d_relu.1} parent=31 // pred_fallthru
        _
    $region32: #{conv2d_relu.1} parent=5 // pred_fallthru
      _
    %p2434 = scmp.le.s32.totalorder 2, %s9
    // Predicated region
    $region37: #{conv2d_relu.1} parent=5 // pred_check
      %p2435 = pneg %p2434
    $region38: #{conv2d_relu.1} parent=5 // pred_check_branch
      %2437 = sbr.rel (%p2435) target = $region40
    $region39: #{conv2d_relu.1} parent=5 // pred_region
      %s2438 = ssub.s32 %s9, 2
      // Predicated region
      $region41: #{conv2d_relu.1} parent=39 // pred_check
        %p2439 = pneg %p106
      $region42: #{conv2d_relu.1} parent=39 // pred_check_branch
        %2441 = sbr.rel (%p2439) target = $region44
      $region43: #{conv2d_relu.1} parent=39 // pred_region
        %p2442 = scmp.lt.s32.totalorder %s15, 1
        %s2443 = scalar_select %p2442, %s15, 1
        %s2444 = smul.addr %s2443, 26
        %s2445 = smul.addr %s2444, 8
        %s2446 = scalar_lea.vmem %s3, %s2445
      $region44: #{conv2d_relu.1} parent=39 // pred_fallthru
        _
    $region40: #{conv2d_relu.1} parent=5 // pred_fallthru
      _
  $region6: #{conv2d_relu.1} parent=0 // loop_footer
    %s13 = sadd.s32 1, %s9
  $region7: #{conv2d_relu.1} parent=0 // loop_footer_branch
    %8 = sbr.rel target = $region3
  $region8: #{conv2d_relu.1} parent=0 // loop_exit
    _

</llo_original>
